<compile_context>
chip_gen: v6e
topology: v6e:2x2x1
jax: 0.10.0
libtpu: 0.0.40
codegen_flags: <defaults>
</compile_context>

<pallas_src>
import functools

import jax
import jax.numpy as jnp
from jax import lax
from jax.experimental import pallas as pl
from jax.experimental.pallas import tpu as pltpu


def _round_up(x, m):
    return (x + m - 1) // m * m


# --------------------------- VMEM budgeting ----------------------------------
def _vmem_capacity_bytes():
    """Physical VMEM of the local TPU generation (v7x: 64 MiB, v5e/v6e: 128)."""
    try:
        cap = int(getattr(pltpu.get_tpu_info(), "vmem_capacity_bytes", 0))
    except Exception:
        cap = 0
    return cap if cap > 0 else 64 * 1024 * 1024          # conservative default


def _estimate_vmem_bytes(th, wo, cin, coutp):
    """Rough per-grid-step VMEM footprint for row-tile height `th` (bytes)."""
    bf16, f32 = 2, 4
    lane = lambda c: _round_up(c, 128)
    sub = lambda s: _round_up(s, 16)
    xp_blk = (th + 4) * sub(wo + 2) * lane(cin) * bf16 * 2      # double-buffered
    out_blk = th * sub(wo) * coutp * f32 * 2                    # double-buffered
    w1 = 3 * sub(3 * cin) * coutp * bf16 * 2
    w2 = 3 * sub(3 * coutp) * coutp * bf16 * 2
    act = (th + 2) * sub(wo + 2) * coutp * bf16                 # scratch
    slab1 = (th + 4) * sub(wo) * lane(3 * cin) * bf16           # conv1 dx slab
    slab2 = (th + 2) * sub(wo) * 3 * coutp * bf16               # conv2 dx slab
    y1 = (th + 2) * sub(wo) * coutp * (f32 + bf16)              # acc + bf16 copy
    y2 = th * sub(wo) * coutp * f32 * 2                         # acc + epilogue
    return int(1.2 * (xp_blk + out_blk + w1 + w2 + act + slab1 + slab2 + y1 + y2))


def _pick_row_tile(ho, wo, cin, coutp, budget, cap=None):
    """Largest divisor of ho that fits the VMEM budget, preferring a matmul M
    dim (TH*WO) in [256, 2048]: >=256 fills the v6e/v7x MXU, <=2048 keeps
    several grid steps per image for pipelining / v7x megacore row-split."""
    divs = [d for d in range(1, ho + 1) if ho % d == 0]
    if cap is not None:
        divs = [d for d in divs if d <= cap] or [1]
    fits = [d for d in divs if _estimate_vmem_bytes(d, wo, cin, coutp) <= budget]
    fits = fits or [min(divs)]
    pref = [d for d in fits if 256 <= d * wo <= 2048]
    if pref:
        return max(pref)
    small = [d for d in fits if d * wo <= 2048]
    return max(small) if small else min(fits)


# ------------------------------- kernel ---------------------------------------
def _double_conv_kernel(xp_ref, w1_ref, s1_ref, b1_ref, w2_ref, s2_ref, b2_ref,
                        o_ref, act_ref):
    # xp_ref : (TH+4, WO+2, cin)   bf16  pooled input rows for this tile
    #                                    (2-row / 1-col zero halo from wrapper)
    # w*_ref : (3, 3*C, coutp)     bf16  HWIO weights regrouped per kernel row dy
    # s*/b*  : (1, coutp)          f32   folded BN scale / (conv bias + BN) bias
    # o_ref  : (TH, WO, coutp)     f32   lane-dense output tile
    # act_ref: (TH+2, WO+2, coutp) bf16  conv1 activation + 1-px halo (scratch)
    t, nt = pl.program_id(1), pl.num_programs(1)
    th, wo, coutp = o_ref.shape
    cin = xp_ref.shape[-1]

    # ---- conv1 + BN1 + ReLU for TH+2 rows (tile rows + conv2's row halo) -----
    # The 3-dx slab is built once; each kernel row dy is a K=3*cin matmul
    # accumulated in f32 (no 9-wide im2col materialisation).
    xp = xp_ref[...]
    slab1 = jnp.concatenate([xp[:, dx:dx + wo, :] for dx in range(3)], axis=-1)
    m1 = (th + 2) * wo
    y1 = jnp.zeros((m1, coutp), jnp.float32)
    for dy in range(3):
        y1 += jnp.dot(slab1[dy:dy + th + 2].reshape(m1, 3 * cin), w1_ref[dy],
                      preferred_element_type=jnp.float32)
    y1 = jnp.maximum(y1 * s1_ref[...] + b1_ref[...], 0.0)

    # ---- stage conv1 activation (bf16) into the haloed scratch ---------------
    act_ref[:, pl.ds(1, wo), :] = (
        y1.reshape(th + 2, wo, coutp).astype(act_ref.dtype))
    zcol = jnp.zeros((th + 2, 1, coutp), act_ref.dtype)
    act_ref[:, pl.ds(0, 1), :] = zcol              # left zero-halo column
    act_ref[:, pl.ds(wo + 1, 1), :] = zcol         # right zero-halo column

    zrow = jnp.zeros((1, wo + 2, coutp), act_ref.dtype)

    @pl.when(t == 0)
    def _():                                       # top image boundary
        act_ref[pl.ds(0, 1)] = zrow

    @pl.when(t == nt - 1)
    def _():                                       # bottom image boundary
        act_ref[pl.ds(th + 1, 1)] = zrow

    # ---- conv2 + BN2 + ReLU : 3 dy-accumulated K=3*coutp matmuls -------------
    act = act_ref[...]
    slab2 = jnp.concatenate([act[:, dx:dx + wo, :] for dx in range(3)], axis=-1)
    m2 = th * wo
    y2 = jnp.zeros((m2, coutp), jnp.float32)
    for dy in range(3):
        y2 += jnp.dot(slab2[dy:dy + th].reshape(m2, 3 * coutp), w2_ref[dy],
                      preferred_element_type=jnp.float32)
    y2 = jnp.maximum(y2 * s2_ref[...] + b2_ref[...], 0.0)
    o_ref[...] = y2.reshape(th, wo, coutp).astype(o_ref.dtype)


# ------------------------------ parameters ------------------------------------
def _prep_params(params, coutp):
    """Pad cout (and conv2's cin) to the lane-dense coutp; regroup HWIO weights
    as (ky, 3*cin, coutp) bf16 so the kernel does one matmul per kernel row."""
    w1, s1, b1, w2, s2, b2 = params
    cin, cout = w1.shape[2], w1.shape[3]
    pc = coutp - cout
    w1m = jnp.pad(w1, ((0, 0), (0, 0), (0, 0), (0, pc))) \
             .reshape(3, 3 * cin, coutp).astype(jnp.bfloat16)
    w2m = jnp.pad(w2, ((0, 0), (0, 0), (0, pc), (0, pc))) \
             .reshape(3, 3 * coutp, coutp).astype(jnp.bfloat16)
    pad1 = lambda v: jnp.pad(v, (0, pc)).reshape(1, coutp)
    return w1m, pad1(s1), pad1(b1), w2m, pad1(s2), pad1(b2)


def init_down_params(key, in_ch, out_ch, eps=1e-5):
    ks = jax.random.split(key, 8)

    def conv_block(kw, kb, kg, kbeta, cin, cout):
        w = 0.1 * jax.random.normal(kw, (3, 3, cin, cout), jnp.float32)  # HWIO
        b = 0.1 * jax.random.normal(kb, (cout,), jnp.float32)
        gamma = 1.0 + 0.1 * jax.random.normal(kg, (cout,), jnp.float32)
        beta = 0.1 * jax.random.normal(kbeta, (cout,), jnp.float32)
        running_mean = jnp.zeros((cout,), jnp.float32)   # PyTorch BN defaults
        running_var = jnp.ones((cout,), jnp.float32)
        scale = gamma / jnp.sqrt(running_var + eps)
        bias = (b - running_mean) * scale + beta         # conv bias folded in
        return w, scale, bias

    w1, s1, b1 = conv_block(ks[0], ks[1], ks[2], ks[3], in_ch, out_ch)
    w2, s2, b2 = conv_block(ks[4], ks[5], ks[6], ks[7], out_ch, out_ch)
    return (w1, s1, b1, w2, s2, b2)


# ------------------------------- forward --------------------------------------
@functools.partial(jax.jit, static_argnames=("max_rows_per_tile",))
def down_forward(x_nchw, params, max_rows_per_tile=None):
    n, cin, h, w = x_nchw.shape
    cout = params[0].shape[3]
    coutp = _round_up(cout, 128)
    ho, wo = h // 2, w // 2

    x = jnp.transpose(x_nchw, (0, 2, 3, 1))                 # NCHW -> NHWC
    # 2x2 max-pool (floor, as nn.MaxPool2d(2)); XLA fuses transpose + pool + pad.
    x = x[:, :2 * ho, :2 * wo, :]
    xp = x.reshape(n, ho, 2, wo, 2, cin).max(axis=(2, 4))
    # conv1 needs a 1-px zero halo; row tiling needs one extra row per side for
    # conv2's recomputed conv1 halo row -> 2-row / 1-col zero pad, cast to bf16.
    xp = jnp.pad(xp, ((0, 0), (2, 2), (1, 1), (0, 0))).astype(jnp.bfloat16)

    # Generation-aware tile / VMEM budget (v7x: 64 MiB, v5e/v6e: 128 MiB).
    cap = _vmem_capacity_bytes()
    budget = int(cap * 0.70)
    vmem_limit = int(cap * 0.85)
    th = _pick_row_tile(ho, wo, cin, coutp, budget, cap=max_rows_per_tile)
    nt = ho // th

    # Overlapping (TH+4)-row slabs so plain Blocked BlockSpecs pipeline the row
    # tiles (the 4 duplicated halo rows per tile are cheap: xp is the smallest
    # tensor here).
    # TODO(synk): a pl.Element-indexed row axis would avoid this HBM duplication.
    rows = jnp.arange(nt)[:, None] * th + jnp.arange(th + 4)[None, :]
    xp_unf = jnp.take(xp, rows, axis=1)            # (n, nt, th+4, wo+2, cin)

    w1m, s1p, b1p, w2m, s2p, b2p = _prep_params(params, coutp)

    flops = 2 * n * ho * wo * coutp * 9 * (cin + coutp)
    bytes_accessed = (xp_unf.size * 2 + w1m.size * 2 + w2m.size * 2
                      + 4 * coutp * 4 + n * ho * wo * coutp * 4)

    out = pl.pallas_call(
        _double_conv_kernel,
        out_shape=jax.ShapeDtypeStruct((n, ho, wo, coutp), jnp.float32),
        grid=(n, nt),
        in_specs=[
            pl.BlockSpec((None, None, th + 4, wo + 2, cin),
                         lambda i, t: (i, t, 0, 0, 0)),
            pl.BlockSpec((3, 3 * cin, coutp), lambda i, t: (0, 0, 0)),
            pl.BlockSpec((1, coutp), lambda i, t: (0, 0)),
            pl.BlockSpec((1, coutp), lambda i, t: (0, 0)),
            pl.BlockSpec((3, 3 * coutp, coutp), lambda i, t: (0, 0, 0)),
            pl.BlockSpec((1, coutp), lambda i, t: (0, 0)),
            pl.BlockSpec((1, coutp), lambda i, t: (0, 0)),
        ],
        out_specs=pl.BlockSpec((None, th, wo, coutp), lambda i, t: (i, t, 0, 0)),
        scratch_shapes=[pltpu.VMEM((th + 2, wo + 2, coutp), jnp.bfloat16)],
        compiler_params=pltpu.CompilerParams(
            dimension_semantics=("parallel", "parallel"),
            vmem_limit_bytes=vmem_limit),
        cost_estimate=pl.CostEstimate(flops=flops, transcendentals=0,
                                      bytes_accessed=bytes_accessed),
    )(xp_unf, w1m, s1p, b1p, w2m, s2p, b2p)

    out = out[..., :cout]                                    # drop cout padding
    return jnp.transpose(out, (0, 3, 1, 2))                  # NHWC -> NCHW


def down_reference(x_nchw, params):
    """Pure-JAX reference (XLA conv) with matching bf16-operand / f32-acc math."""
    w1, s1, b1, w2, s2, b2 = params
    x = jnp.transpose(x_nchw, (0, 2, 3, 1))
    n, h, w, c = x.shape
    x = x[:, :2 * (h // 2), :2 * (w // 2), :]
    x = x.reshape(n, h // 2, 2, w // 2, 2, c).max(axis=(2, 4))

    def cbr(x, wk, s, b):
        y = lax.conv_general_dilated(
            x.astype(jnp.bfloat16), wk.astype(jnp.bfloat16), (1, 1),
            ((1, 1), (1, 1)), dimension_numbers=("NHWC", "HWIO", "NHWC"),
            preferred_element_type=jnp.float32)
        return jnp.maximum(y * s + b, 0.0)

    x = cbr(x, w1, s1, b1)
    x = cbr(x, w2, s2, b2)
    return jnp.transpose(x, (0, 3, 1, 2))


if __name__ == "__main__":
    in_ch, out_ch = 4, 8
    key = jax.random.PRNGKey(0)
    kx, kp = jax.random.split(key)
    x = jax.random.normal(kx, (2, in_ch, 16, 16), jnp.float32)   # NCHW
    params = init_down_params(kp, in_ch, out_ch)

    ref = down_reference(x, params)

    out = jax.block_until_ready(down_forward(x, params))
    assert out.shape == (2, out_ch, 8, 8), out.shape
    assert jnp.allclose(out, ref, atol=5e-2, rtol=5e-2), float(
        jnp.max(jnp.abs(out - ref)))

    # Force multiple row tiles to exercise the conv2 halo across tile borders.
    out_tiled = jax.block_until_ready(
        down_forward(x, params, max_rows_per_tile=2))
    assert jnp.allclose(out_tiled, ref, atol=5e-2, rtol=5e-2), float(
        jnp.max(jnp.abs(out_tiled - ref)))

    print("KERNEL_OK")
</pallas_src>

<mosaic_0001>
module attributes {stable_mosaic.version = 11 : i64} {
  func.func @_double_conv_kernel(%arg0: i32, %arg1: i32, %arg2: memref<1x1x12x10x4xbf16, #tpu.memory_space<vmem>>, %arg3: memref<3x12x128xbf16, #tpu.memory_space<vmem>>, %arg4: memref<1x128xf32, #tpu.memory_space<vmem>>, %arg5: memref<1x128xf32, #tpu.memory_space<vmem>>, %arg6: memref<3x384x128xbf16, #tpu.memory_space<vmem>>, %arg7: memref<1x128xf32, #tpu.memory_space<vmem>>, %arg8: memref<1x128xf32, #tpu.memory_space<vmem>>, %arg9: memref<1x8x8x128xf32, #tpu.memory_space<vmem>>, %arg10: memref<10x10x128xbf16, #tpu.memory_space<vmem>>) attributes {dimension_semantics = [#tpu.dimension_semantics<parallel>, #tpu.dimension_semantics<parallel>], iteration_bounds = array<i64: 2, 1>, scalar_prefetch = 0 : i64, scratch_operands = 1 : i64, tpu.core_type = #tpu.core_type<tc>, window_params = [{transform_indices = @transform_0, window_bounds = array<i64: 1, 1, 12, 10, 4>}, {pipeline_mode = #tpu.pipeline_mode<synchronous>, transform_indices = @transform_1, window_bounds = array<i64: 3, 12, 128>}, {pipeline_mode = #tpu.pipeline_mode<synchronous>, transform_indices = @transform_2, window_bounds = array<i64: 1, 128>}, {pipeline_mode = #tpu.pipeline_mode<synchronous>, transform_indices = @transform_3, window_bounds = array<i64: 1, 128>}, {pipeline_mode = #tpu.pipeline_mode<synchronous>, transform_indices = @transform_4, window_bounds = array<i64: 3, 384, 128>}, {pipeline_mode = #tpu.pipeline_mode<synchronous>, transform_indices = @transform_5, window_bounds = array<i64: 1, 128>}, {pipeline_mode = #tpu.pipeline_mode<synchronous>, transform_indices = @transform_6, window_bounds = array<i64: 1, 128>}, {transform_indices = @transform_7, window_bounds = array<i64: 1, 8, 8, 128>}]} {
    %c0 = arith.constant 0 : index
    %c0_0 = arith.constant 0 : index
    %c0_1 = arith.constant 0 : index
    %c0_2 = arith.constant 0 : index
    %c0_3 = arith.constant 0 : index
    %0 = vector.load %arg2[%c0, %c0_0, %c0_1, %c0_2, %c0_3] : memref<1x1x12x10x4xbf16, #tpu.memory_space<vmem>>, vector<1x1x12x10x4xbf16>
    %1 = vector.shape_cast %0 : vector<1x1x12x10x4xbf16> to vector<12x10x4xbf16>
    %2 = vector.extract_strided_slice %1 {offsets = [0, 0, 0], sizes = [12, 8, 4], strides = [1, 1, 1]} : vector<12x10x4xbf16> to vector<12x8x4xbf16>
    %3 = vector.extract_strided_slice %1 {offsets = [0, 1, 0], sizes = [12, 8, 4], strides = [1, 1, 1]} : vector<12x10x4xbf16> to vector<12x8x4xbf16>
    %4 = vector.extract_strided_slice %1 {offsets = [0, 2, 0], sizes = [12, 8, 4], strides = [1, 1, 1]} : vector<12x10x4xbf16> to vector<12x8x4xbf16>
    %5 = tpu.concatenate %2, %3, %4 in 2 : vector<12x8x4xbf16>, vector<12x8x4xbf16>, vector<12x8x4xbf16> -> vector<12x8x12xbf16>
    %cst = arith.constant 0.000000e+00 : f32
    %6 = vector.broadcast %cst : f32 to vector<80x128xf32>
    %7 = vector.extract_strided_slice %5 {offsets = [0, 0, 0], sizes = [10, 8, 12], strides = [1, 1, 1]} : vector<12x8x12xbf16> to vector<10x8x12xbf16>
    %8 = vector.shape_cast %7 : vector<10x8x12xbf16> to vector<80x12xbf16>
    %c0_4 = arith.constant 0 : index
    %c0_5 = arith.constant 0 : index
    %c0_6 = arith.constant 0 : index
    %9 = vector.load %arg3[%c0_4, %c0_5, %c0_6] : memref<3x12x128xbf16, #tpu.memory_space<vmem>>, vector<1x12x128xbf16>
    %10 = vector.shape_cast %9 : vector<1x12x128xbf16> to vector<12x128xbf16>
    %cst_7 = arith.constant dense<0.000000e+00> : vector<80x128xf32>
    %11 = tpu.matmul %8, %10, %cst_7 {dimension_numbers = #tpu.dot_dimension_numbers<[1], [0], [0], [1], [0, 0, 1, 1], [], []>} : vector<80x12xbf16>, vector<12x128xbf16>, vector<80x128xf32> -> vector<80x128xf32>
    %12 = arith.addf %6, %11 : vector<80x128xf32>
    %13 = vector.extract_strided_slice %5 {offsets = [1, 0, 0], sizes = [10, 8, 12], strides = [1, 1, 1]} : vector<12x8x12xbf16> to vector<10x8x12xbf16>
    %14 = vector.shape_cast %13 : vector<10x8x12xbf16> to vector<80x12xbf16>
    %c1 = arith.constant 1 : index
    %c0_8 = arith.constant 0 : index
    %c0_9 = arith.constant 0 : index
    %15 = vector.load %arg3[%c1, %c0_8, %c0_9] : memref<3x12x128xbf16, #tpu.memory_space<vmem>>, vector<1x12x128xbf16>
    %16 = vector.shape_cast %15 : vector<1x12x128xbf16> to vector<12x128xbf16>
    %cst_10 = arith.constant dense<0.000000e+00> : vector<80x128xf32>
    %17 = tpu.matmul %14, %16, %cst_10 {dimension_numbers = #tpu.dot_dimension_numbers<[1], [0], [0], [1], [0, 0, 1, 1], [], []>} : vector<80x12xbf16>, vector<12x128xbf16>, vector<80x128xf32> -> vector<80x128xf32>
    %18 = arith.addf %12, %17 : vector<80x128xf32>
    %19 = vector.extract_strided_slice %5 {offsets = [2, 0, 0], sizes = [10, 8, 12], strides = [1, 1, 1]} : vector<12x8x12xbf16> to vector<10x8x12xbf16>
    %20 = vector.shape_cast %19 : vector<10x8x12xbf16> to vector<80x12xbf16>
    %c2 = arith.constant 2 : index
    %c0_11 = arith.constant 0 : index
    %c0_12 = arith.constant 0 : index
    %21 = vector.load %arg3[%c2, %c0_11, %c0_12] : memref<3x12x128xbf16, #tpu.memory_space<vmem>>, vector<1x12x128xbf16>
    %22 = vector.shape_cast %21 : vector<1x12x128xbf16> to vector<12x128xbf16>
    %cst_13 = arith.constant dense<0.000000e+00> : vector<80x128xf32>
    %23 = tpu.matmul %20, %22, %cst_13 {dimension_numbers = #tpu.dot_dimension_numbers<[1], [0], [0], [1], [0, 0, 1, 1], [], []>} : vector<80x12xbf16>, vector<12x128xbf16>, vector<80x128xf32> -> vector<80x128xf32>
    %24 = arith.addf %18, %23 : vector<80x128xf32>
    %c0_14 = arith.constant 0 : index
    %c0_15 = arith.constant 0 : index
    %25 = vector.load %arg4[%c0_14, %c0_15] : memref<1x128xf32, #tpu.memory_space<vmem>>, vector<1x128xf32>
    %26 = vector.broadcast %25 : vector<1x128xf32> to vector<80x128xf32>
    %27 = arith.mulf %24, %26 : vector<80x128xf32>
    %c0_16 = arith.constant 0 : index
    %c0_17 = arith.constant 0 : index
    %28 = vector.load %arg5[%c0_16, %c0_17] : memref<1x128xf32, #tpu.memory_space<vmem>>, vector<1x128xf32>
    %29 = vector.broadcast %28 : vector<1x128xf32> to vector<80x128xf32>
    %30 = arith.addf %27, %29 : vector<80x128xf32>
    %cst_18 = arith.constant 0.000000e+00 : f32
    %31 = vector.broadcast %cst_18 : f32 to vector<80x128xf32>
    %32 = arith.maximumf %30, %31 : vector<80x128xf32>
    %33 = vector.shape_cast %32 : vector<80x128xf32> to vector<10x8x128xf32>
    %34 = arith.truncf %33 : vector<10x8x128xf32> to vector<10x8x128xbf16>
    %c0_19 = arith.constant 0 : index
    %c1_20 = arith.constant 1 : index
    %c0_21 = arith.constant 0 : index
    %35 = vector.load %arg10[%c0_19, %c1_20, %c0_21] : memref<10x10x128xbf16, #tpu.memory_space<vmem>>, vector<10x8x128xbf16>
    tpu.vector_store %arg10[%c0_19, %c1_20, %c0_21], %34 {strides = array<i32>} : memref<10x10x128xbf16, #tpu.memory_space<vmem>>, vector<10x8x128xbf16>,
    %cst_22 = arith.constant 0.000000e+00 : bf16
    %36 = vector.broadcast %cst_22 : bf16 to vector<10x1x128xbf16>
    %c0_23 = arith.constant 0 : index
    %c0_24 = arith.constant 0 : index
    %c0_25 = arith.constant 0 : index
    %37 = vector.load %arg10[%c0_23, %c0_24, %c0_25] : memref<10x10x128xbf16, #tpu.memory_space<vmem>>, vector<10x1x128xbf16>
    tpu.vector_store %arg10[%c0_23, %c0_24, %c0_25], %36 {strides = array<i32>} : memref<10x10x128xbf16, #tpu.memory_space<vmem>>, vector<10x1x128xbf16>,
    %c0_26 = arith.constant 0 : index
    %c9 = arith.constant 9 : index
    %c0_27 = arith.constant 0 : index
    %38 = vector.load %arg10[%c0_26, %c9, %c0_27] : memref<10x10x128xbf16, #tpu.memory_space<vmem>>, vector<10x1x128xbf16>
    tpu.vector_store %arg10[%c0_26, %c9, %c0_27], %36 {strides = array<i32>} : memref<10x10x128xbf16, #tpu.memory_space<vmem>>, vector<10x1x128xbf16>,
    %cst_28 = arith.constant 0.000000e+00 : bf16
    %39 = vector.broadcast %cst_28 : bf16 to vector<1x10x128xbf16>
    %c0_i32 = arith.constant 0 : i32
    %40 = arith.cmpi eq, %arg1, %c0_i32 : i32
    %41 = arith.extui %40 : i1 to i32
    %c0_i32_29 = arith.constant 0 : i32
    %42 = arith.cmpi ne, %41, %c0_i32_29 : i32
    scf.if %42 {
      %c0_57 = arith.constant 0 : index
      %c0_58 = arith.constant 0 : index
      %c0_59 = arith.constant 0 : index
      %82 = vector.load %arg10[%c0_57, %c0_58, %c0_59] : memref<10x10x128xbf16, #tpu.memory_space<vmem>>, vector<1x10x128xbf16>
      tpu.vector_store %arg10[%c0_57, %c0_58, %c0_59], %39 {strides = array<i32>} : memref<10x10x128xbf16, #tpu.memory_space<vmem>>, vector<1x10x128xbf16>,
    } else {
    }
    %c0_i32_30 = arith.constant 0 : i32
    %43 = arith.cmpi eq, %arg1, %c0_i32_30 : i32
    %44 = arith.extui %43 : i1 to i32
    %c0_i32_31 = arith.constant 0 : i32
    %45 = arith.cmpi ne, %44, %c0_i32_31 : i32
    scf.if %45 {
      %c9_57 = arith.constant 9 : index
      %c0_58 = arith.constant 0 : index
      %c0_59 = arith.constant 0 : index
      %82 = vector.load %arg10[%c9_57, %c0_58, %c0_59] : memref<10x10x128xbf16, #tpu.memory_space<vmem>>, vector<1x10x128xbf16>
      tpu.vector_store %arg10[%c9_57, %c0_58, %c0_59], %39 {strides = array<i32>} : memref<10x10x128xbf16, #tpu.memory_space<vmem>>, vector<1x10x128xbf16>,
    } else {
    }
    %c0_32 = arith.constant 0 : index
    %c0_33 = arith.constant 0 : index
    %c0_34 = arith.constant 0 : index
    %46 = vector.load %arg10[%c0_32, %c0_33, %c0_34] : memref<10x10x128xbf16, #tpu.memory_space<vmem>>, vector<10x10x128xbf16>
    %47 = vector.extract_strided_slice %46 {offsets = [0, 0, 0], sizes = [10, 8, 128], strides = [1, 1, 1]} : vector<10x10x128xbf16> to vector<10x8x128xbf16>
    %48 = vector.extract_strided_slice %46 {offsets = [0, 1, 0], sizes = [10, 8, 128], strides = [1, 1, 1]} : vector<10x10x128xbf16> to vector<10x8x128xbf16>
    %49 = vector.extract_strided_slice %46 {offsets = [0, 2, 0], sizes = [10, 8, 128], strides = [1, 1, 1]} : vector<10x10x128xbf16> to vector<10x8x128xbf16>
    %50 = tpu.concatenate %47, %48, %49 in 2 : vector<10x8x128xbf16>, vector<10x8x128xbf16>, vector<10x8x128xbf16> -> vector<10x8x384xbf16>
    %cst_35 = arith.constant 0.000000e+00 : f32
    %51 = vector.broadcast %cst_35 : f32 to vector<64x128xf32>
    %52 = vector.extract_strided_slice %50 {offsets = [0, 0, 0], sizes = [8, 8, 384], strides = [1, 1, 1]} : vector<10x8x384xbf16> to vector<8x8x384xbf16>
    %53 = vector.shape_cast %52 : vector<8x8x384xbf16> to vector<64x384xbf16>
    %c0_36 = arith.constant 0 : index
    %c0_37 = arith.constant 0 : index
    %c0_38 = arith.constant 0 : index
    %54 = vector.load %arg6[%c0_36, %c0_37, %c0_38] : memref<3x384x128xbf16, #tpu.memory_space<vmem>>, vector<1x384x128xbf16>
    %55 = vector.shape_cast %54 : vector<1x384x128xbf16> to vector<384x128xbf16>
    %cst_39 = arith.constant dense<0.000000e+00> : vector<64x128xf32>
    %56 = tpu.matmul %53, %55, %cst_39 {dimension_numbers = #tpu.dot_dimension_numbers<[1], [0], [0], [1], [0, 0, 1, 1], [], []>} : vector<64x384xbf16>, vector<384x128xbf16>, vector<64x128xf32> -> vector<64x128xf32>
    %57 = arith.addf %51, %56 : vector<64x128xf32>
    %58 = vector.extract_strided_slice %50 {offsets = [1, 0, 0], sizes = [8, 8, 384], strides = [1, 1, 1]} : vector<10x8x384xbf16> to vector<8x8x384xbf16>
    %59 = vector.shape_cast %58 : vector<8x8x384xbf16> to vector<64x384xbf16>
    %c1_40 = arith.constant 1 : index
    %c0_41 = arith.constant 0 : index
    %c0_42 = arith.constant 0 : index
    %60 = vector.load %arg6[%c1_40, %c0_41, %c0_42] : memref<3x384x128xbf16, #tpu.memory_space<vmem>>, vector<1x384x128xbf16>
    %61 = vector.shape_cast %60 : vector<1x384x128xbf16> to vector<384x128xbf16>
    %cst_43 = arith.constant dense<0.000000e+00> : vector<64x128xf32>
    %62 = tpu.matmul %59, %61, %cst_43 {dimension_numbers = #tpu.dot_dimension_numbers<[1], [0], [0], [1], [0, 0, 1, 1], [], []>} : vector<64x384xbf16>, vector<384x128xbf16>, vector<64x128xf32> -> vector<64x128xf32>
    %63 = arith.addf %57, %62 : vector<64x128xf32>
    %64 = vector.extract_strided_slice %50 {offsets = [2, 0, 0], sizes = [8, 8, 384], strides = [1, 1, 1]} : vector<10x8x384xbf16> to vector<8x8x384xbf16>
    %65 = vector.shape_cast %64 : vector<8x8x384xbf16> to vector<64x384xbf16>
    %c2_44 = arith.constant 2 : index
    %c0_45 = arith.constant 0 : index
    %c0_46 = arith.constant 0 : index
    %66 = vector.load %arg6[%c2_44, %c0_45, %c0_46] : memref<3x384x128xbf16, #tpu.memory_space<vmem>>, vector<1x384x128xbf16>
    %67 = vector.shape_cast %66 : vector<1x384x128xbf16> to vector<384x128xbf16>
    %cst_47 = arith.constant dense<0.000000e+00> : vector<64x128xf32>
    %68 = tpu.matmul %65, %67, %cst_47 {dimension_numbers = #tpu.dot_dimension_numbers<[1], [0], [0], [1], [0, 0, 1, 1], [], []>} : vector<64x384xbf16>, vector<384x128xbf16>, vector<64x128xf32> -> vector<64x128xf32>
    %69 = arith.addf %63, %68 : vector<64x128xf32>
    %c0_48 = arith.constant 0 : index
    %c0_49 = arith.constant 0 : index
    %70 = vector.load %arg7[%c0_48, %c0_49] : memref<1x128xf32, #tpu.memory_space<vmem>>, vector<1x128xf32>
    %71 = vector.broadcast %70 : vector<1x128xf32> to vector<64x128xf32>
    %72 = arith.mulf %69, %71 : vector<64x128xf32>
    %c0_50 = arith.constant 0 : index
    %c0_51 = arith.constant 0 : index
    %73 = vector.load %arg8[%c0_50, %c0_51] : memref<1x128xf32, #tpu.memory_space<vmem>>, vector<1x128xf32>
    %74 = vector.broadcast %73 : vector<1x128xf32> to vector<64x128xf32>
    %75 = arith.addf %72, %74 : vector<64x128xf32>
    %cst_52 = arith.constant 0.000000e+00 : f32
    %76 = vector.broadcast %cst_52 : f32 to vector<64x128xf32>
    %77 = arith.maximumf %75, %76 : vector<64x128xf32>
    %78 = vector.shape_cast %77 : vector<64x128xf32> to vector<8x8x128xf32>
    %c0_53 = arith.constant 0 : index
    %c0_54 = arith.constant 0 : index
    %c0_55 = arith.constant 0 : index
    %c0_56 = arith.constant 0 : index
    %79 = vector.load %arg9[%c0_53, %c0_54, %c0_55, %c0_56] : memref<1x8x8x128xf32, #tpu.memory_space<vmem>>, vector<1x8x8x128xf32>
    %80 = vector.shape_cast %79 : vector<1x8x8x128xf32> to vector<8x8x128xf32>
    %81 = vector.shape_cast %78 : vector<8x8x128xf32> to vector<1x8x8x128xf32>
    tpu.vector_store %arg9[%c0_53, %c0_54, %c0_55, %c0_56], %81 {strides = array<i32>} : memref<1x8x8x128xf32, #tpu.memory_space<vmem>>, vector<1x8x8x128xf32>,
    return
  }
  func.func @transform_0(%arg0: i32, %arg1: i32) -> (i32, i32, i32, i32, i32) {
    %c0_i32 = arith.constant 0 : i32
    %c0_i32_0 = arith.constant 0 : i32
    %c0_i32_1 = arith.constant 0 : i32
    %c0_i32_2 = arith.constant 0 : i32
    return %arg0, %arg1, %c0_i32, %c0_i32_0, %c0_i32_1 : i32, i32, i32, i32, i32
  }
  func.func @transform_1(%arg0: i32, %arg1: i32) -> (i32, i32, i32) {
    %c0_i32 = arith.constant 0 : i32
    %c0_i32_0 = arith.constant 0 : i32
    %c0_i32_1 = arith.constant 0 : i32
    %c0_i32_2 = arith.constant 0 : i32
    return %c0_i32, %c0_i32_0, %c0_i32_1 : i32, i32, i32
  }
  func.func @transform_2(%arg0: i32, %arg1: i32) -> (i32, i32) {
    %c0_i32 = arith.constant 0 : i32
    %c0_i32_0 = arith.constant 0 : i32
    %c0_i32_1 = arith.constant 0 : i32
    return %c0_i32, %c0_i32_0 : i32, i32
  }
  func.func @transform_3(%arg0: i32, %arg1: i32) -> (i32, i32) {
    %c0_i32 = arith.constant 0 : i32
    %c0_i32_0 = arith.constant 0 : i32
    %c0_i32_1 = arith.constant 0 : i32
    return %c0_i32, %c0_i32_0 : i32, i32
  }
  func.func @transform_4(%arg0: i32, %arg1: i32) -> (i32, i32, i32) {
    %c0_i32 = arith.constant 0 : i32
    %c0_i32_0 = arith.constant 0 : i32
    %c0_i32_1 = arith.constant 0 : i32
    %c0_i32_2 = arith.constant 0 : i32
    return %c0_i32, %c0_i32_0, %c0_i32_1 : i32, i32, i32
  }
  func.func @transform_5(%arg0: i32, %arg1: i32) -> (i32, i32) {
    %c0_i32 = arith.constant 0 : i32
    %c0_i32_0 = arith.constant 0 : i32
    %c0_i32_1 = arith.constant 0 : i32
    return %c0_i32, %c0_i32_0 : i32, i32
  }
  func.func @transform_6(%arg0: i32, %arg1: i32) -> (i32, i32) {
    %c0_i32 = arith.constant 0 : i32
    %c0_i32_0 = arith.constant 0 : i32
    %c0_i32_1 = arith.constant 0 : i32
    return %c0_i32, %c0_i32_0 : i32, i32
  }
  func.func @transform_7(%arg0: i32, %arg1: i32) -> (i32, i32, i32, i32) {
    %c0_i32 = arith.constant 0 : i32
    %c0_i32_0 = arith.constant 0 : i32
    %c0_i32_1 = arith.constant 0 : i32
    return %arg0, %arg1, %c0_i32, %c0_i32_0 : i32, i32, i32, i32
  }
}

</mosaic_0001>

<llo_original>
// kernel: down_forward.1
$region0: #{down_forward.1}
  #allocation0 [shape = 'u32[]', space=smem, size = 0x4, offset = 0x4, fixed_abs, tag = 'smem constant byte address 0x4 - core index']
  #allocation1 [shape = 'u32[144,128]{1,0:T(1,128)}', space=vmem, size = 0x12000, scoped, tag = 'internal scratch']
  #allocation2 [shape = 'bf16[10,10,128]{2,1,0:T(8,128)(2,1)}', space=vmem, size = 0xa000, scoped, tag = 'scratch operand']
  %s0 = inlined_call_operand.vmem [shape: bf16[2,1,12,10,4], index: 0, kind: input, shape index: {}]
  %s1 = inlined_call_operand.vmem [shape: bf16[3,12,128], index: 1, kind: input, shape index: {}]
  %s2 = inlined_call_operand.vmem [shape: f32[1,128], index: 2, kind: input, shape index: {}]
  %s3 = inlined_call_operand.vmem [shape: f32[1,128], index: 3, kind: input, shape index: {}]
  %s4 = inlined_call_operand.vmem [shape: bf16[3,384,128], index: 4, kind: input, shape index: {}]
  %s5 = inlined_call_operand.vmem [shape: f32[1,128], index: 5, kind: input, shape index: {}]
  %s6 = inlined_call_operand.vmem [shape: f32[1,128], index: 6, kind: input, shape index: {}]
  %s7 = inlined_call_operand.vmem [shape: f32[2,8,8,128], index: 7, kind: output, shape index: {}]
  %s8 = sld [smem:[#allocation0]]
  $region65: #{down_forward.1} parent=0
    _
  %s10 = ssub.s32 1, %s8
  %s11 = scalar_select 0, %s10, %s8
  loop: start=0, step=1, limit=4
  $region2: #{down_forward.1} parent=0 // loop_pre_header
    _
  $region3: #{down_forward.1} parent=0 // loop_header
    %s13 = sphi 0, %s17
    %p14 = scmp.ge.s32.totalorder %s13, 4
    %s20 = sphi 0, %s32
    %s21 = sphi 0, %s28
    %s22 = sphi 0, %s20
    %s23 = sphi 0, %s21
    %s24 = sphi 0, %s22
    %s25 = sphi 0, %s23
    %s37 = sphi 0, %s39
    %s40 = sphi 0, %s37
    %s41 = sphi 0, %s40
    %s57 = sphi 0, %s41
    %s61 = sphi 0, %s61
    %s63 = sphi 0, %s61
    %s64 = sphi 0, %s63
    %s78 = sphi 0, %s64
    %s82 = sphi 0, %s82
    %s84 = sphi 0, %s82
    %s85 = sphi 0, %s84
    %s99 = sphi 0, %s85
    %s103 = sphi 0, %s103
    %s105 = sphi 0, %s103
    %s106 = sphi 0, %s105
    %s120 = sphi 0, %s106
    %s124 = sphi 0, %s124
    %s126 = sphi 0, %s124
    %s127 = sphi 0, %s126
    %s141 = sphi 0, %s127
    %s145 = sphi 0, %s145
    %s147 = sphi 0, %s145
    %s148 = sphi 0, %s147
    %s162 = sphi 0, %s148
    %s166 = sphi 0, %s166
    %s168 = sphi 0, %s166
    %s169 = sphi 0, %s168
    %s183 = sphi 0, %s169
    %s191 = sphi 0, %s193
    %s194 = sphi 0, %s191
    %s195 = sphi 0, %s194
    %s211 = sphi 0, %s195
  $region4: #{down_forward.1} parent=0 // loop_header_branch
    %16 = sbr.rel (%p14) target = $region8
  $region5: #{down_forward.1} parent=0 // loop_body
    %s18 = ssub.s32 %s13, 1
    %s19 = ssub.s32 %s13, 2
    %s26 = sadd.s32 1, %s21
    %p27 = scmp.ge.s32.totalorder %s26, 1
    %s28 = scalar_select %p27, 0, %s26
    %s29 = sadd.s32 1, %s20
    %s30 = scalar_select %p27, %s29, %s20
    %p31 = scmp.ge.s32.totalorder %s30, 2
    %s32 = scalar_select %p31, 0, %s30
    %s33 = ssub.s32 %s20, %s32
    %s34 = ssub.s32 %s21, %s28
    %s35 = sor.u32 %s33, %s34
    %p36 = scmp.eq.s32.totalorder %s35, 0
    %s38 = sadd.s32 %s37, 1
    %s39 = scalar_select %p36, %s37, %s38
    %p42 = pneg %p36
    %p43 = scmp.eq.s32.totalorder %s13, 1
    %p44 = por %p42, %p43
    %p45 = scmp.ne.s32.totalorder %s37, %s40
    %p46 = scmp.eq.s32.totalorder %s13, 0
    %p47 = por %p45, %p46
    %p48 = scmp.ne.s32.totalorder %s37, %s40
    %p49 = scmp.eq.s32.totalorder %s18, 1
    %p50 = por %p48, %p49
    %p51 = scmp.ne.s32.totalorder %s40, %s41
    %p52 = scmp.eq.s32.totalorder %s18, 0
    %p53 = por %p51, %p52
    %p54 = scmp.ne.s32.totalorder %s40, %s41
    %p55 = scmp.eq.s32.totalorder %s19, 1
    %p56 = por %p54, %p55
    %p58 = scmp.ne.s32.totalorder %s41, %s57
    %p59 = scmp.eq.s32.totalorder %s19, 0
    %p60 = por %p58, %p59
    %s62 = sadd.s32 %s61, 1
    %p65 = scmp.eq.s32.totalorder %s13, 1
    %p66 = scmp.ne.s32.totalorder %s61, %s63
    %p67 = scmp.eq.s32.totalorder %s13, 0
    %p68 = por %p66, %p67
    %p69 = scmp.ne.s32.totalorder %s61, %s63
    %p70 = scmp.eq.s32.totalorder %s18, 1
    %p71 = por %p69, %p70
    %p72 = scmp.ne.s32.totalorder %s63, %s64
    %p73 = scmp.eq.s32.totalorder %s18, 0
    %p74 = por %p72, %p73
    %p75 = scmp.ne.s32.totalorder %s63, %s64
    %p76 = scmp.eq.s32.totalorder %s19, 1
    %p77 = por %p75, %p76
    %p79 = scmp.ne.s32.totalorder %s64, %s78
    %p80 = scmp.eq.s32.totalorder %s19, 0
    %p81 = por %p79, %p80
    %s83 = sadd.s32 %s82, 1
    %p86 = scmp.eq.s32.totalorder %s13, 1
    %p87 = scmp.ne.s32.totalorder %s82, %s84
    %p88 = scmp.eq.s32.totalorder %s13, 0
    %p89 = por %p87, %p88
    %p90 = scmp.ne.s32.totalorder %s82, %s84
    %p91 = scmp.eq.s32.totalorder %s18, 1
    %p92 = por %p90, %p91
    %p93 = scmp.ne.s32.totalorder %s84, %s85
    %p94 = scmp.eq.s32.totalorder %s18, 0
    %p95 = por %p93, %p94
    %p96 = scmp.ne.s32.totalorder %s84, %s85
    %p97 = scmp.eq.s32.totalorder %s19, 1
    %p98 = por %p96, %p97
    %p100 = scmp.ne.s32.totalorder %s85, %s99
    %p101 = scmp.eq.s32.totalorder %s19, 0
    %p102 = por %p100, %p101
    %s104 = sadd.s32 %s103, 1
    %p107 = scmp.eq.s32.totalorder %s13, 1
    %p108 = scmp.ne.s32.totalorder %s103, %s105
    %p109 = scmp.eq.s32.totalorder %s13, 0
    %p110 = por %p108, %p109
    %p111 = scmp.ne.s32.totalorder %s103, %s105
    %p112 = scmp.eq.s32.totalorder %s18, 1
    %p113 = por %p111, %p112
    %p114 = scmp.ne.s32.totalorder %s105, %s106
    %p115 = scmp.eq.s32.totalorder %s18, 0
    %p116 = por %p114, %p115
    %p117 = scmp.ne.s32.totalorder %s105, %s106
    %p118 = scmp.eq.s32.totalorder %s19, 1
    %p119 = por %p117, %p118
    %p121 = scmp.ne.s32.totalorder %s106, %s120
    %p122 = scmp.eq.s32.totalorder %s19, 0
    %p123 = por %p121, %p122
    %s125 = sadd.s32 %s124, 1
    %p128 = scmp.eq.s32.totalorder %s13, 1
    %p129 = scmp.ne.s32.totalorder %s124, %s126
    %p130 = scmp.eq.s32.totalorder %s13, 0
    %p131 = por %p129, %p130
    %p132 = scmp.ne.s32.totalorder %s124, %s126
    %p133 = scmp.eq.s32.totalorder %s18, 1
    %p134 = por %p132, %p133
    %p135 = scmp.ne.s32.totalorder %s126, %s127
    %p136 = scmp.eq.s32.totalorder %s18, 0
    %p137 = por %p135, %p136
    %p138 = scmp.ne.s32.totalorder %s126, %s127
    %p139 = scmp.eq.s32.totalorder %s19, 1
    %p140 = por %p138, %p139
    %p142 = scmp.ne.s32.totalorder %s127, %s141
    %p143 = scmp.eq.s32.totalorder %s19, 0
    %p144 = por %p142, %p143
    %s146 = sadd.s32 %s145, 1
    %p149 = scmp.eq.s32.totalorder %s13, 1
    %p150 = scmp.ne.s32.totalorder %s145, %s147
    %p151 = scmp.eq.s32.totalorder %s13, 0
    %p152 = por %p150, %p151
    %p153 = scmp.ne.s32.totalorder %s145, %s147
    %p154 = scmp.eq.s32.totalorder %s18, 1
    %p155 = por %p153, %p154
    %p156 = scmp.ne.s32.totalorder %s147, %s148
    %p157 = scmp.eq.s32.totalorder %s18, 0
    %p158 = por %p156, %p157
    %p159 = scmp.ne.s32.totalorder %s147, %s148
    %p160 = scmp.eq.s32.totalorder %s19, 1
    %p161 = por %p159, %p160
    %p163 = scmp.ne.s32.totalorder %s148, %s162
    %p164 = scmp.eq.s32.totalorder %s19, 0
    %p165 = por %p163, %p164
    %s167 = sadd.s32 %s166, 1
    %p170 = scmp.eq.s32.totalorder %s13, 1
    %p171 = scmp.ne.s32.totalorder %s166, %s168
    %p172 = scmp.eq.s32.totalorder %s13, 0
    %p173 = por %p171, %p172
    %p174 = scmp.ne.s32.totalorder %s166, %s168
    %p175 = scmp.eq.s32.totalorder %s18, 1
    %p176 = por %p174, %p175
    %p177 = scmp.ne.s32.totalorder %s168, %s169
    %p178 = scmp.eq.s32.totalorder %s18, 0
    %p179 = por %p177, %p178
    %p180 = scmp.ne.s32.totalorder %s168, %s169
    %p181 = scmp.eq.s32.totalorder %s19, 1
    %p182 = por %p180, %p181
    %p184 = scmp.ne.s32.totalorder %s169, %s183
    %p185 = scmp.eq.s32.totalorder %s19, 0
    %p186 = por %p184, %p185
    %s187 = ssub.s32 %s20, %s32
    %s188 = ssub.s32 %s21, %s28
    %s189 = sor.u32 %s187, %s188
    %p190 = scmp.eq.s32.totalorder %s189, 0
    %s192 = sadd.s32 %s191, 1
    %s193 = scalar_select %p190, %s191, %s192
    %p196 = pneg %p190
    %p197 = scmp.eq.s32.totalorder %s13, 1
    %p198 = por %p196, %p197
    %p199 = scmp.ne.s32.totalorder %s191, %s194
    %p200 = scmp.eq.s32.totalorder %s13, 0
    %p201 = por %p199, %p200
    %p202 = scmp.ne.s32.totalorder %s191, %s194
    %p203 = scmp.eq.s32.totalorder %s18, 1
    %p204 = por %p202, %p203
    %p205 = scmp.ne.s32.totalorder %s194, %s195
    %p206 = scmp.eq.s32.totalorder %s18, 0
    %p207 = por %p205, %p206
    %p208 = scmp.ne.s32.totalorder %s194, %s195
    %p209 = scmp.eq.s32.totalorder %s19, 1
    %p210 = por %p208, %p209
    %p212 = scmp.ne.s32.totalorder %s195, %s211
    %p213 = scmp.eq.s32.totalorder %s19, 0
    %p214 = por %p212, %p213
    %p215 = scmp.le.s32.totalorder 1, %s13
    %p216 = scmp.lt.s32.totalorder %s13, 3
    %p217 = pnand %p215, %p216
    %p218 = pneg %p217
    // Predicated region
    $region9: #{down_forward.1} parent=5 // pred_check
      _
    $region10: #{down_forward.1} parent=5 // pred_check_branch
      %220 = sbr.rel (%p217) target = $region12
    $region11: #{down_forward.1} parent=5 // pred_region
      %s221 = ssub.s32 %s13, 1
      // Predicated region
      $region13: #{down_forward.1} parent=11 // pred_check
        %p222 = pneg %p74
      $region14: #{down_forward.1} parent=11 // pred_check_branch
        %224 = sbr.rel (%p222) target = $region16
      $region15: #{down_forward.1} parent=11 // pred_region
        _
      $region16: #{down_forward.1} parent=11 // pred_fallthru
        _
      // Predicated region
      $region17: #{down_forward.1} parent=11 // pred_check
        %p225 = pneg %p95
      $region18: #{down_forward.1} parent=11 // pred_check_branch
        %227 = sbr.rel (%p225) target = $region20
      $region19: #{down_forward.1} parent=11 // pred_region
        _
      $region20: #{down_forward.1} parent=11 // pred_fallthru
        _
      // Predicated region
      $region21: #{down_forward.1} parent=11 // pred_check
        %p228 = pneg %p116
      $region22: #{down_forward.1} parent=11 // pred_check_branch
        %230 = sbr.rel (%p228) target = $region24
      $region23: #{down_forward.1} parent=11 // pred_region
        _
      $region24: #{down_forward.1} parent=11 // pred_fallthru
        _
      // Predicated region
      $region25: #{down_forward.1} parent=11 // pred_check
        %p231 = pneg %p137
      $region26: #{down_forward.1} parent=11 // pred_check_branch
        %233 = sbr.rel (%p231) target = $region28
      $region27: #{down_forward.1} parent=11 // pred_region
        _
      $region28: #{down_forward.1} parent=11 // pred_fallthru
        _
      // Predicated region
      $region29: #{down_forward.1} parent=11 // pred_check
        %p234 = pneg %p158
      $region30: #{down_forward.1} parent=11 // pred_check_branch
        %236 = sbr.rel (%p234) target = $region32
      $region31: #{down_forward.1} parent=11 // pred_region
        _
      $region32: #{down_forward.1} parent=11 // pred_fallthru
        _
      // Predicated region
      $region33: #{down_forward.1} parent=11 // pred_check
        %p237 = pneg %p179
      $region34: #{down_forward.1} parent=11 // pred_check_branch
        %239 = sbr.rel (%p237) target = $region36
      $region35: #{down_forward.1} parent=11 // pred_region
        _
      $region36: #{down_forward.1} parent=11 // pred_fallthru
        _
    $region12: #{down_forward.1} parent=5 // pred_fallthru
      _
    %p240 = scmp.lt.s32.totalorder %s13, 2
    // Predicated region
    $region37: #{down_forward.1} parent=5 // pred_check
      %p241 = pneg %p240
    $region38: #{down_forward.1} parent=5 // pred_check_branch
      %243 = sbr.rel (%p241) target = $region40
    $region39: #{down_forward.1} parent=5 // pred_region
      // Predicated region
      $region41: #{down_forward.1} parent=39 // pred_check
        %p244 = pneg %p47
      $region42: #{down_forward.1} parent=39 // pred_check_branch
        %246 = sbr.rel (%p244) target = $region44
      $region43: #{down_forward.1} parent=39 // pred_region
        %p247 = scmp.lt.s32.totalorder %s20, 1
        %s248 = scalar_select %p247, %s20, 1
        %p249 = scmp.lt.s32.totalorder %s21, 0
        %s250 = scalar_select %p249, %s21, 0
        %s251 = smul.addr %s250, 24
        %s252 = smul.addr %s248, 24
        %s253 = sadd.s32 %s251, %s252
        %s254 = smul.addr %s253, 4
        %s255 = scalar_lea.vmem %s0, %s254
      $region44: #{down_forward.1} parent=39 // pred_fallthru
        _
    $region40: #{down_forward.1} parent=5 // pred_fallthru
      _
    %p256 = scmp.le.s32.totalorder 1, %s13
    %p257 = scmp.lt.s32.totalorder %s13, 3
    %p258 = pnand %p256, %p257
    %p259 = pneg %p258
    // Predicated region
    $region45: #{down_forward.1} parent=5 // pred_check
      _
    $region46: #{down_forward.1} parent=5 // pred_check_branch
      %261 = sbr.rel (%p258) target = $region48
    $region47: #{down_forward.1} parent=5 // pred_region
      %s262 = ssub.s32 %s13, 1
      %p263 = scmp.lt.s32.totalorder %s22, 1
      %s264 = scalar_select %p263, %s22, 1
      %p265 = scmp.lt.s32.totalorder %s23, 0
      %s266 = scalar_select %p265, %s23, 0
      %s267 = smul.addr %s266, 24
      %s268 = smul.addr %s264, 24
      %s269 = sadd.s32 %s267, %s268
      %s270 = smul.addr %s269, 4
      %s271 = scalar_lea.vmem %s0, %s270
      %p272 = pneg %p53
      %p273 = pneg %p50
      %p274 = pneg %p74
      %p275 = pneg %p71
      %p276 = pneg %p95
      %p277 = pneg %p92
      %p278 = pneg %p116
      %p279 = pneg %p113
      %p280 = pneg %p137
      %p281 = pneg %p134
      %p282 = pneg %p158
      %p283 = pneg %p155
      %p284 = pneg %p179
      %p285 = pneg %p176
      %p286 = pneg %p207
      %p287 = pneg %p204
      %s288 = smul.u32 8, %s23
      %p289 = scmp.lt.s32.totalorder %s22, 1
      %s290 = scalar_select %p289, %s22, 1
      %p291 = scmp.lt.s32.totalorder %s288, 7
      %s292 = scalar_select %p291, %s288, 7
      %s293 = smul.addr %s290, 8
      %s294 = sadd.s32 %s292, %s293
      %s295 = smul.addr %s294, 8
      %s296 = scalar_lea.vmem %s7, %s295
      %p297 = scmp.lt.s32.totalorder %s22, 1
      %s298 = scalar_select %p297, %s22, 1
      %p299 = scmp.lt.s32.totalorder %s23, 0
      %s300 = scalar_select %p299, %s23, 0
      %s301 = smul.addr %s300, 24
      %s302 = smul.addr %s298, 24
      %s303 = sadd.s32 %s301, %s302
      %s304 = smul.addr %s303, 4
      %s305 = scalar_lea.vmem %s0, %s304
      %s306 = smul.u32 8, %s23
      %p307 = scmp.lt.s32.totalorder %s22, 1
      %s308 = scalar_select %p307, %s22, 1
      %p309 = scmp.lt.s32.totalorder %s306, 7
      %s310 = scalar_select %p309, %s306, 7
      %s311 = smul.addr %s308, 8
      %s312 = sadd.s32 %s310, %s311
      %s313 = smul.addr %s312, 8
      %s314 = scalar_lea.vmem %s7, %s313
      %s315 = smul.u32 8, %s23
      %v317 = vld [vmem:[%s305] sm:$0xf]
      %v318 = vld [vmem:[%s305 + $0x4] sm:$0x1]
      %v319 = vld [vmem:[%s305 + $0x8] sm:$0xf]
      %v320 = vld [vmem:[%s305 + $0xc] sm:$0x1]
      %v321 = vld [vmem:[%s305 + $0x10] sm:$0xf]
      %v322 = vld [vmem:[%s305 + $0x14] sm:$0x1]
      %v323 = vld [vmem:[%s305 + $0x18] sm:$0xf]
      %v324 = vld [vmem:[%s305 + $0x1c] sm:$0x1]
      %v325 = vld [vmem:[%s305 + $0x20] sm:$0xf]
      %v326 = vld [vmem:[%s305 + $0x24] sm:$0x1]
      %v327 = vld [vmem:[%s305 + $0x28] sm:$0xf]
      %v328 = vld [vmem:[%s305 + $0x2c] sm:$0x1]
      %v329 = vld [vmem:[%s305 + $0x30] sm:$0xf]
      %v330 = vld [vmem:[%s305 + $0x34] sm:$0x1]
      %v331 = vld [vmem:[%s305 + $0x38] sm:$0xf]
      %v332 = vld [vmem:[%s305 + $0x3c] sm:$0x1]
      %v333 = vld [vmem:[%s305 + $0x40] sm:$0xf]
      %v334 = vld [vmem:[%s305 + $0x44] sm:$0x1]
      %v335 = vld [vmem:[%s305 + $0x48] sm:$0xf]
      %v336 = vld [vmem:[%s305 + $0x4c] sm:$0x1]
      %v337 = vld [vmem:[%s305 + $0x50] sm:$0xf]
      %v338 = vld [vmem:[%s305 + $0x54] sm:$0x1]
      %v339 = vld [vmem:[%s305 + $0x58] sm:$0xf]
      %v340 = vld [vmem:[%s305 + $0x5c] sm:$0x1]
      %v365 = vunpack.c.l.b16 %v317
      %v366 = vunpack.c.l.b16 %v318
      %v367 = vunpack.c.l.b16 %v319
      %v368 = vunpack.c.l.b16 %v320
      %v369 = vunpack.c.l.b16 %v321
      %v370 = vunpack.c.l.b16 %v322
      %v371 = vunpack.c.l.b16 %v323
      %v372 = vunpack.c.l.b16 %v324
      %v373 = vunpack.c.l.b16 %v325
      %v374 = vunpack.c.l.b16 %v326
      %v375 = vunpack.c.l.b16 %v327
      %v376 = vunpack.c.l.b16 %v328
      %v377 = vunpack.c.l.b16 %v329
      %v378 = vunpack.c.l.b16 %v330
      %v379 = vunpack.c.l.b16 %v331
      %v380 = vunpack.c.l.b16 %v332
      %v381 = vunpack.c.l.b16 %v333
      %v382 = vunpack.c.l.b16 %v334
      %v383 = vunpack.c.l.b16 %v335
      %v384 = vunpack.c.l.b16 %v336
      %v385 = vunpack.c.l.b16 %v337
      %v386 = vunpack.c.l.b16 %v338
      %v387 = vunpack.c.l.b16 %v339
      %v388 = vunpack.c.l.b16 %v340
      %v389 = vpack.c.b16 %v366, %v365
      %v390 = vpack.c.b16 %v368, %v367
      %v391 = vpack.c.b16 %v370, %v369
      %v392 = vpack.c.b16 %v372, %v371
      %v393 = vpack.c.b16 %v374, %v373
      %v394 = vpack.c.b16 %v376, %v375
      %v395 = vpack.c.b16 %v378, %v377
      %v396 = vpack.c.b16 %v380, %v379
      %v397 = vpack.c.b16 %v382, %v381
      %v398 = vpack.c.b16 %v384, %v383
      %v399 = vpack.c.b16 %v386, %v385
      %v400 = vpack.c.b16 %v388, %v387
      %v402 = vshrl.u32 %v389, 16
      %v404 = vshll.u32 %v389, 16
      %v406 = vrot.slane %v404, 1
      %v407 = vor.u32 %v402, %v406
      %v409 = vshrl.u32 %v390, 16
      %v411 = vshll.u32 %v390, 16
      %v413 = vrot.slane %v411, 1
      %v414 = vor.u32 %v409, %v413
      %v416 = vshrl.u32 %v391, 16
      %v418 = vshll.u32 %v391, 16
      %v420 = vrot.slane %v418, 1
      %v421 = vor.u32 %v416, %v420
      %v423 = vshrl.u32 %v392, 16
      %v425 = vshll.u32 %v392, 16
      %v427 = vrot.slane %v425, 1
      %v428 = vor.u32 %v423, %v427
      %v430 = vshrl.u32 %v393, 16
      %v432 = vshll.u32 %v393, 16
      %v434 = vrot.slane %v432, 1
      %v435 = vor.u32 %v430, %v434
      %v437 = vshrl.u32 %v394, 16
      %v439 = vshll.u32 %v394, 16
      %v441 = vrot.slane %v439, 1
      %v442 = vor.u32 %v437, %v441
      %v444 = vshrl.u32 %v395, 16
      %v446 = vshll.u32 %v395, 16
      %v448 = vrot.slane %v446, 1
      %v449 = vor.u32 %v444, %v448
      %v451 = vshrl.u32 %v396, 16
      %v453 = vshll.u32 %v396, 16
      %v455 = vrot.slane %v453, 1
      %v456 = vor.u32 %v451, %v455
      %v458 = vshrl.u32 %v397, 16
      %v460 = vshll.u32 %v397, 16
      %v462 = vrot.slane %v460, 1
      %v463 = vor.u32 %v458, %v462
      %v465 = vshrl.u32 %v398, 16
      %v467 = vshll.u32 %v398, 16
      %v469 = vrot.slane %v467, 1
      %v470 = vor.u32 %v465, %v469
      %v472 = vshrl.u32 %v399, 16
      %v474 = vshll.u32 %v399, 16
      %v476 = vrot.slane %v474, 1
      %v477 = vor.u32 %v472, %v476
      %v479 = vshrl.u32 %v400, 16
      %v481 = vshll.u32 %v400, 16
      %v483 = vrot.slane %v481, 1
      %v484 = vor.u32 %v479, %v483
      %485 = vrot.lane.b32.xlu0 %v407, 4
      %v486 = vpop.permute.xlu0 %485
      %487 = vrot.lane.b32.xlu0 %v414, 4
      %v488 = vpop.permute.xlu0 %487
      %489 = vrot.lane.b32.xlu0 %v421, 4
      %v490 = vpop.permute.xlu0 %489
      %491 = vrot.lane.b32.xlu0 %v428, 4
      %v492 = vpop.permute.xlu0 %491
      %493 = vrot.lane.b32.xlu0 %v435, 4
      %v494 = vpop.permute.xlu0 %493
      %495 = vrot.lane.b32.xlu0 %v442, 4
      %v496 = vpop.permute.xlu0 %495
      %497 = vrot.lane.b32.xlu0 %v449, 4
      %v498 = vpop.permute.xlu0 %497
      %499 = vrot.lane.b32.xlu0 %v456, 4
      %v500 = vpop.permute.xlu0 %499
      %501 = vrot.lane.b32.xlu0 %v463, 4
      %v502 = vpop.permute.xlu0 %501
      %503 = vrot.lane.b32.xlu0 %v470, 4
      %v504 = vpop.permute.xlu0 %503
      %505 = vrot.lane.b32.xlu0 %v477, 4
      %v506 = vpop.permute.xlu0 %505
      %507 = vrot.lane.b32.xlu0 %v484, 4
      %v508 = vpop.permute.xlu0 %507
      %v509 = vrot.slane %v389, 1
      %v510 = vrot.slane %v390, 1
      %v511 = vrot.slane %v391, 1
      %v512 = vrot.slane %v392, 1
      %v513 = vrot.slane %v393, 1
      %v514 = vrot.slane %v394, 1
      %v515 = vrot.slane %v395, 1
      %v516 = vrot.slane %v396, 1
      %v517 = vrot.slane %v397, 1
      %v518 = vrot.slane %v398, 1
      %v519 = vrot.slane %v399, 1
      %v520 = vrot.slane %v400, 1
      %521 = vrot.lane.b32.xlu0 %v509, 8
      %v522 = vpop.permute.xlu0 %521
      %523 = vrot.lane.b32.xlu0 %v510, 8
      %v524 = vpop.permute.xlu0 %523
      %525 = vrot.lane.b32.xlu0 %v511, 8
      %v526 = vpop.permute.xlu0 %525
      %527 = vrot.lane.b32.xlu0 %v512, 8
      %v528 = vpop.permute.xlu0 %527
      %529 = vrot.lane.b32.xlu0 %v513, 8
      %v530 = vpop.permute.xlu0 %529
      %531 = vrot.lane.b32.xlu0 %v514, 8
      %v532 = vpop.permute.xlu0 %531
      %533 = vrot.lane.b32.xlu0 %v515, 8
      %v534 = vpop.permute.xlu0 %533
      %535 = vrot.lane.b32.xlu0 %v516, 8
      %v536 = vpop.permute.xlu0 %535
      %537 = vrot.lane.b32.xlu0 %v517, 8
      %v538 = vpop.permute.xlu0 %537
      %539 = vrot.lane.b32.xlu0 %v518, 8
      %v540 = vpop.permute.xlu0 %539
      %541 = vrot.lane.b32.xlu0 %v519, 8
      %v542 = vpop.permute.xlu0 %541
      %543 = vrot.lane.b32.xlu0 %v520, 8
      %v544 = vpop.permute.xlu0 %543
      %vm545 = vcmask 31744
      %v548 = vsel %vm545, %v317, %v486
      %v551 = vsel %vm545, %v319, %v488
      %v554 = vsel %vm545, %v321, %v490
      %v557 = vsel %vm545, %v323, %v492
      %v560 = vsel %vm545, %v325, %v494
      %v563 = vsel %vm545, %v327, %v496
      %v566 = vsel %vm545, %v329, %v498
      %v569 = vsel %vm545, %v331, %v500
      %v572 = vsel %vm545, %v333, %v502
      %v575 = vsel %vm545, %v335, %v504
      %v578 = vsel %vm545, %v337, %v506
      %v581 = vsel %vm545, %v339, %v508
      %vm582 = vcmask 64512
      %v584 = vsel %vm582, %v548, %v522
      %v586 = vsel %vm582, %v551, %v524
      %v588 = vsel %vm582, %v554, %v526
      %v590 = vsel %vm582, %v557, %v528
      %v592 = vsel %vm582, %v560, %v530
      %v594 = vsel %vm582, %v563, %v532
      %v596 = vsel %vm582, %v566, %v534
      %v598 = vsel %vm582, %v569, %v536
      %v600 = vsel %vm582, %v572, %v538
      %v602 = vsel %vm582, %v575, %v540
      %v604 = vsel %vm582, %v578, %v542
      %v606 = vsel %vm582, %v581, %v544
      %v607 = vld [vmem:[%s1] sm:$0xf]
      %v608 = vld [vmem:[%s1 + $0x4] sm:$0x3]
      %s609 = scalar_lea.vmem %s1, 8
      %v610 = vld [vmem:[%s609] sm:$0xf]
      %v611 = vld [vmem:[%s609 + $0x4] sm:$0x3]
      %v622 = vunpack.c.l.b16 %v586
      %v623 = vunpack.c.l.b16 %v588
      %v624 = vunpack.c.l.b16 %v590
      %v625 = vunpack.c.l.b16 %v592
      %v626 = vunpack.c.l.b16 %v594
      %v627 = vunpack.c.l.b16 %v596
      %v628 = vunpack.c.l.b16 %v598
      %v629 = vunpack.c.l.b16 %v600
      %v630 = vunpack.c.l.b16 %v602
      %v631 = vunpack.c.l.b16 %v604
      %v632 = vpack.c.b16 %v623, %v622
      %v633 = vpack.c.b16 %v625, %v624
      %v634 = vpack.c.b16 %v627, %v626
      %v635 = vpack.c.b16 %v629, %v628
      %v636 = vpack.c.b16 %v631, %v630
      %v639 = vunpack.c.l.b16 %v610
      %v640 = vunpack.c.l.b16 %v611
      %v641 = vpack.c.b16 %v640, %v639
      %vm642 = vcmask 97280
      %v644 = vsel %vm642, %v632, 0
      %v647 = vsel %vm642, %v633, 0
      %v650 = vsel %vm642, %v634, 0
      %v653 = vsel %vm642, %v635, 0
      %v656 = vsel %vm642, %v636, 0
      %vm658 = vcmask 1045504
      %v660 = vsel %vm658, %v641, 0
      %662 = vmatprep.subr.bf16.mxu0 0
      %663 = vmatpush1.bf16.msra.mxu0 0
      %664 = vmatprep.subr.bf16.mxu0 0
      %665 = vmatpush1.bf16.msra.mxu0 0
      %666 = vmatprep.subr.bf16.mxu0 0
      %667 = vmatpush1.bf16.msra.mxu0 0
      %668 = vmatprep.subr.bf16.mxu0 0
      %669 = vmatpush1.bf16.msra.mxu0 0
      %670 = vmatprep.subr.bf16.mxu0 0
      %671 = vmatpush1.bf16.msra.mxu0 0
      %672 = vmatprep.subr.bf16.mxu0 0
      %673 = vmatpush1.bf16.msra.mxu0 0
      %674 = vmatprep.subr.bf16.mxu0 0
      %675 = vmatpush1.bf16.msra.mxu0 0
      %676 = vmatprep.subr.bf16.mxu0 0
      %677 = vmatpush1.bf16.msra.mxu0 %v660
      %678 = vmatprep.subr.bf16.mxu0 0
      %679 = vmatpush2.bf16.msra.mxu0 0
      %680 = vmatprep.subr.bf16.mxu0 0
      %681 = vmatpush2.bf16.msra.mxu0 0
      %682 = vmatprep.subr.bf16.mxu0 0
      %683 = vmatpush2.bf16.msra.mxu0 0
      %684 = vmatprep.subr.bf16.mxu0 0
      %685 = vmatpush2.bf16.msra.mxu0 0
      %686 = vmatprep.subr.bf16.mxu0 0
      %687 = vmatpush2.bf16.msra.mxu0 0
      %688 = vmatprep.subr.bf16.mxu0 0
      %689 = vmatpush2.bf16.msra.mxu0 0
      %690 = vmatprep.subr.bf16.mxu0 0
      %691 = vmatpush2.bf16.msra.mxu0 0
      %692 = vmatprep.subr.bf16.mxu0 0
      %693 = vmatpush2.bf16.msra.mxu0 0
      %694 = vmatprep.mubr.bf16.mxu0 0
      %695 = vmatmul.mubr.bf16.gmra.mxu0 %v644
      %v696 = vpop.f32.mrf.mxu0
      %v697 = vadd.f32 0.0, %v696
      %v698 = vpop.f32.mrf.mxu0
      %v699 = vpop.f32.mrf.mxu0
      %v700 = vadd.f32 0.0, %v699
      %v701 = vpop.f32.mrf.mxu0
      %702 = vmatprep.mubr.bf16.mxu0 0
      %703 = vmatmul.mubr.bf16.gmra.mxu0 %v647
      %v704 = vpop.f32.mrf.mxu0
      %v705 = vadd.f32 0.0, %v704
      %v706 = vpop.f32.mrf.mxu0
      %v707 = vpop.f32.mrf.mxu0
      %v708 = vadd.f32 0.0, %v707
      %v709 = vpop.f32.mrf.mxu0
      %710 = vmatprep.mubr.bf16.mxu0 0
      %711 = vmatmul.mubr.bf16.gmra.mxu0 %v650
      %v712 = vpop.f32.mrf.mxu0
      %v713 = vadd.f32 0.0, %v712
      %v714 = vpop.f32.mrf.mxu0
      %v715 = vpop.f32.mrf.mxu0
      %v716 = vadd.f32 0.0, %v715
      %v717 = vpop.f32.mrf.mxu0
      %718 = vmatprep.mubr.bf16.mxu0 0
      %719 = vmatmul.mubr.bf16.gmra.mxu0 %v653
      %v720 = vpop.f32.mrf.mxu0
      %v721 = vadd.f32 0.0, %v720
      %v722 = vpop.f32.mrf.mxu0
      %v723 = vpop.f32.mrf.mxu0
      %v724 = vadd.f32 0.0, %v723
      %v725 = vpop.f32.mrf.mxu0
      %726 = vmatprep.mubr.bf16.mxu0 0
      %727 = vmatmul.mubr.bf16.gmra.mxu0 %v656
      %v728 = vpop.f32.mrf.mxu0
      %v729 = vadd.f32 0.0, %v728
      %v730 = vpop.f32.mrf.mxu0
      %v731 = vpop.f32.mrf.mxu0
      %v732 = vadd.f32 0.0, %v731
      %v733 = vpop.f32.mrf.mxu0
      %734 = vdwg.mxu0
      %v736 = vunpack.c.l.b16 %v584
      %v737 = vpack.c.b16 %v622, %v736
      %v738 = vpack.c.b16 %v624, %v623
      %v739 = vpack.c.b16 %v626, %v625
      %v740 = vpack.c.b16 %v628, %v627
      %v741 = vpack.c.b16 %v630, %v629
      %v744 = vunpack.c.l.b16 %v607
      %v745 = vunpack.c.l.b16 %v608
      %v746 = vpack.c.b16 %v745, %v744
      %v748 = vsel %vm642, %v737, 0
      %v751 = vsel %vm642, %v738, 0
      %v754 = vsel %vm642, %v739, 0
      %v757 = vsel %vm642, %v740, 0
      %v760 = vsel %vm642, %v741, 0
      %v763 = vsel %vm658, %v746, 0
      %765 = vmatprep.subr.bf16.mxu0 0
      %766 = vmatpush1.bf16.msra.mxu0 0
      %767 = vmatprep.subr.bf16.mxu0 0
      %768 = vmatpush1.bf16.msra.mxu0 0
      %769 = vmatprep.subr.bf16.mxu0 0
      %770 = vmatpush1.bf16.msra.mxu0 0
      %771 = vmatprep.subr.bf16.mxu0 0
      %772 = vmatpush1.bf16.msra.mxu0 0
      %773 = vmatprep.subr.bf16.mxu0 0
      %774 = vmatpush1.bf16.msra.mxu0 0
      %775 = vmatprep.subr.bf16.mxu0 0
      %776 = vmatpush1.bf16.msra.mxu0 0
      %777 = vmatprep.subr.bf16.mxu0 0
      %778 = vmatpush1.bf16.msra.mxu0 0
      %779 = vmatprep.subr.bf16.mxu0 0
      %780 = vmatpush1.bf16.msra.mxu0 %v763
      %781 = vmatprep.subr.bf16.mxu0 0
      %782 = vmatpush2.bf16.msra.mxu0 0
      %783 = vmatprep.subr.bf16.mxu0 0
      %784 = vmatpush2.bf16.msra.mxu0 0
      %785 = vmatprep.subr.bf16.mxu0 0
      %786 = vmatpush2.bf16.msra.mxu0 0
      %787 = vmatprep.subr.bf16.mxu0 0
      %788 = vmatpush2.bf16.msra.mxu0 0
      %789 = vmatprep.subr.bf16.mxu0 0
      %790 = vmatpush2.bf16.msra.mxu0 0
      %791 = vmatprep.subr.bf16.mxu0 0
      %792 = vmatpush2.bf16.msra.mxu0 0
      %793 = vmatprep.subr.bf16.mxu0 0
      %794 = vmatpush2.bf16.msra.mxu0 0
      %795 = vmatprep.subr.bf16.mxu0 0
      %796 = vmatpush2.bf16.msra.mxu0 0
      %797 = vmatprep.mubr.bf16.mxu0 0
      %798 = vmatmul.mubr.bf16.gmra.mxu0 %v748
      %v799 = vpop.f32.mrf.mxu0
      %v800 = vadd.f32 %v697, %v799
      %v801 = vpop.f32.mrf.mxu0
      %v802 = vpop.f32.mrf.mxu0
      %v803 = vadd.f32 %v700, %v802
      %v804 = vpop.f32.mrf.mxu0
      %805 = vmatprep.mubr.bf16.mxu0 0
      %806 = vmatmul.mubr.bf16.gmra.mxu0 %v751
      %v807 = vpop.f32.mrf.mxu0
      %v808 = vadd.f32 %v705, %v807
      %v809 = vpop.f32.mrf.mxu0
      %v810 = vpop.f32.mrf.mxu0
      %v811 = vadd.f32 %v708, %v810
      %v812 = vpop.f32.mrf.mxu0
      %813 = vmatprep.mubr.bf16.mxu0 0
      %814 = vmatmul.mubr.bf16.gmra.mxu0 %v754
      %v815 = vpop.f32.mrf.mxu0
      %v816 = vadd.f32 %v713, %v815
      %v817 = vpop.f32.mrf.mxu0
      %v818 = vpop.f32.mrf.mxu0
      %v819 = vadd.f32 %v716, %v818
      %v820 = vpop.f32.mrf.mxu0
      %821 = vmatprep.mubr.bf16.mxu0 0
      %822 = vmatmul.mubr.bf16.gmra.mxu0 %v757
      %v823 = vpop.f32.mrf.mxu0
      %v824 = vadd.f32 %v721, %v823
      %v825 = vpop.f32.mrf.mxu0
      %v826 = vpop.f32.mrf.mxu0
      %v827 = vadd.f32 %v724, %v826
      %v828 = vpop.f32.mrf.mxu0
      %829 = vmatprep.mubr.bf16.mxu0 0
      %830 = vmatmul.mubr.bf16.gmra.mxu0 %v760
      %v831 = vpop.f32.mrf.mxu0
      %v832 = vadd.f32 %v729, %v831
      %v833 = vpop.f32.mrf.mxu0
      %v834 = vpop.f32.mrf.mxu0
      %v835 = vadd.f32 %v732, %v834
      %v836 = vpop.f32.mrf.mxu0
      %837 = vdwg.mxu0
      %s838 = scalar_lea.vmem %s1, 16
      %v839 = vld [vmem:[%s838] sm:$0xf]
      %v840 = vld [vmem:[%s838 + $0x4] sm:$0x3]
      %v842 = vunpack.c.l.b16 %v606
      %v843 = vpack.c.b16 %v842, %v631
      %v846 = vunpack.c.l.b16 %v839
      %v847 = vunpack.c.l.b16 %v840
      %v848 = vpack.c.b16 %v847, %v846
      %v850 = vsel %vm642, %v843, 0
      %v853 = vsel %vm658, %v848, 0
      %855 = vmatprep.subr.bf16.mxu0 0
      %856 = vmatpush1.bf16.msra.mxu0 0
      %857 = vmatprep.subr.bf16.mxu0 0
      %858 = vmatpush1.bf16.msra.mxu0 0
      %859 = vmatprep.subr.bf16.mxu0 0
      %860 = vmatpush1.bf16.msra.mxu0 0
      %861 = vmatprep.subr.bf16.mxu0 0
      %862 = vmatpush1.bf16.msra.mxu0 0
      %863 = vmatprep.subr.bf16.mxu0 0
      %864 = vmatpush1.bf16.msra.mxu0 0
      %865 = vmatprep.subr.bf16.mxu0 0
      %866 = vmatpush1.bf16.msra.mxu0 0
      %867 = vmatprep.subr.bf16.mxu0 0
      %868 = vmatpush1.bf16.msra.mxu0 0
      %869 = vmatprep.subr.bf16.mxu0 0
      %870 = vmatpush1.bf16.msra.mxu0 %v853
      %871 = vmatprep.subr.bf16.mxu0 0
      %872 = vmatpush2.bf16.msra.mxu0 0
      %873 = vmatprep.subr.bf16.mxu0 0
      %874 = vmatpush2.bf16.msra.mxu0 0
      %875 = vmatprep.subr.bf16.mxu0 0
      %876 = vmatpush2.bf16.msra.mxu0 0
      %877 = vmatprep.subr.bf16.mxu0 0
      %878 = vmatpush2.bf16.msra.mxu0 0
      %879 = vmatprep.subr.bf16.mxu0 0
      %880 = vmatpush2.bf16.msra.mxu0 0
      %881 = vmatprep.subr.bf16.mxu0 0
      %882 = vmatpush2.bf16.msra.mxu0 0
      %883 = vmatprep.subr.bf16.mxu0 0
      %884 = vmatpush2.bf16.msra.mxu0 0
      %885 = vmatprep.subr.bf16.mxu0 0
      %886 = vmatpush2.bf16.msra.mxu0 0
      %887 = vmatprep.mubr.bf16.mxu0 0
      %888 = vmatmul.mubr.bf16.gmra.mxu0 %v751
      %v889 = vpop.f32.mrf.mxu0
      %v890 = vadd.f32 0.0, %v889
      %v891 = vpop.f32.mrf.mxu0
      %v892 = vpop.f32.mrf.mxu0
      %v893 = vadd.f32 0.0, %v892
      %v894 = vpop.f32.mrf.mxu0
      %895 = vmatprep.mubr.bf16.mxu0 0
      %896 = vmatmul.mubr.bf16.gmra.mxu0 %v754
      %v897 = vpop.f32.mrf.mxu0
      %v898 = vadd.f32 0.0, %v897
      %v899 = vpop.f32.mrf.mxu0
      %v900 = vpop.f32.mrf.mxu0
      %v901 = vadd.f32 0.0, %v900
      %v902 = vpop.f32.mrf.mxu0
      %903 = vmatprep.mubr.bf16.mxu0 0
      %904 = vmatmul.mubr.bf16.gmra.mxu0 %v757
      %v905 = vpop.f32.mrf.mxu0
      %v906 = vadd.f32 0.0, %v905
      %v907 = vpop.f32.mrf.mxu0
      %v908 = vpop.f32.mrf.mxu0
      %v909 = vadd.f32 0.0, %v908
      %v910 = vpop.f32.mrf.mxu0
      %911 = vmatprep.mubr.bf16.mxu0 0
      %912 = vmatmul.mubr.bf16.gmra.mxu0 %v760
      %v913 = vpop.f32.mrf.mxu0
      %v914 = vadd.f32 0.0, %v913
      %v915 = vpop.f32.mrf.mxu0
      %v916 = vpop.f32.mrf.mxu0
      %v917 = vadd.f32 0.0, %v916
      %v918 = vpop.f32.mrf.mxu0
      %919 = vmatprep.mubr.bf16.mxu0 0
      %920 = vmatmul.mubr.bf16.gmra.mxu0 %v850
      %v921 = vpop.f32.mrf.mxu0
      %v922 = vadd.f32 0.0, %v921
      %v923 = vpop.f32.mrf.mxu0
      %v924 = vpop.f32.mrf.mxu0
      %v925 = vadd.f32 0.0, %v924
      %v926 = vpop.f32.mrf.mxu0
      %927 = vdwg.mxu0
      %v928 = vadd.f32 %v800, %v890
      %v929 = vadd.f32 %v803, %v893
      %v930 = vadd.f32 %v808, %v898
      %v931 = vadd.f32 %v811, %v901
      %v932 = vadd.f32 %v816, %v906
      %v933 = vadd.f32 %v819, %v909
      %v934 = vadd.f32 %v824, %v914
      %v935 = vadd.f32 %v827, %v917
      %v936 = vadd.f32 %v832, %v922
      %v937 = vadd.f32 %v835, %v925
      %v938 = vld [vmem:[%s2] sm:$0x1]
      %v940 = vlaneseq
      %v941 = vshrl.u32 %v940, 7
      %v942 = vsub.s32 0, %v941
      %v943 = vrot.slane %v938, %v942
      %v945 = vmul.f32 %v928, %v943
      %v946 = vmul.f32 %v929, %v943
      %v947 = vmul.f32 %v930, %v943
      %v948 = vmul.f32 %v931, %v943
      %v949 = vmul.f32 %v932, %v943
      %v950 = vmul.f32 %v933, %v943
      %v951 = vmul.f32 %v934, %v943
      %v952 = vmul.f32 %v935, %v943
      %v953 = vmul.f32 %v936, %v943
      %v954 = vmul.f32 %v937, %v943
      %v955 = vld [vmem:[%s3] sm:$0x1]
      %v957 = vlaneseq
      %v958 = vshrl.u32 %v957, 7
      %v959 = vsub.s32 0, %v958
      %v960 = vrot.slane %v955, %v959
      %v962 = vadd.f32 %v945, %v960
      %v963 = vadd.f32 %v946, %v960
      %v964 = vadd.f32 %v947, %v960
      %v965 = vadd.f32 %v948, %v960
      %v966 = vadd.f32 %v949, %v960
      %v967 = vadd.f32 %v950, %v960
      %v968 = vadd.f32 %v951, %v960
      %v969 = vadd.f32 %v952, %v960
      %v970 = vadd.f32 %v953, %v960
      %v971 = vadd.f32 %v954, %v960
      %v972 = vmax.f32 %v962, 0.0
      %v973 = vmax.f32 %v963, 0.0
      %v974 = vmax.f32 %v964, 0.0
      %v975 = vmax.f32 %v965, 0.0
      %v976 = vmax.f32 %v966, 0.0
      %v977 = vmax.f32 %v967, 0.0
      %v978 = vmax.f32 %v968, 0.0
      %v979 = vmax.f32 %v969, 0.0
      %v980 = vmax.f32 %v970, 0.0
      %v981 = vmax.f32 %v971, 0.0
      %v982 = vpack.c.bf16 %v972, %v972
      %v983 = vpack.c.bf16 %v973, %v973
      %v984 = vpack.c.bf16 %v974, %v974
      %v985 = vpack.c.bf16 %v975, %v975
      %v986 = vpack.c.bf16 %v976, %v976
      %v987 = vpack.c.bf16 %v977, %v977
      %v988 = vpack.c.bf16 %v978, %v978
      %v989 = vpack.c.bf16 %v979, %v979
      %v990 = vpack.c.bf16 %v980, %v980
      %v991 = vpack.c.bf16 %v981, %v981
      %v1002 = vunpack.c.l.b16 %v982
      %v1003 = vunpack.c.l.b16 %v983
      %v1004 = vunpack.c.l.b16 %v984
      %v1005 = vunpack.c.l.b16 %v985
      %v1006 = vunpack.c.l.b16 %v986
      %v1007 = vunpack.c.l.b16 %v987
      %v1008 = vunpack.c.l.b16 %v988
      %v1009 = vunpack.c.l.b16 %v989
      %v1010 = vunpack.c.l.b16 %v990
      %v1011 = vunpack.c.l.b16 %v991
      %v1012 = vpack.c.b16 %v1002, %v1002
      %v1013 = vpack.c.b16 %v1003, %v1003
      %v1014 = vpack.c.b16 %v1004, %v1004
      %v1015 = vpack.c.b16 %v1005, %v1005
      %v1016 = vpack.c.b16 %v1006, %v1006
      %v1017 = vpack.c.b16 %v1007, %v1007
      %v1018 = vpack.c.b16 %v1008, %v1008
      %v1019 = vpack.c.b16 %v1009, %v1009
      %v1020 = vpack.c.b16 %v1010, %v1010
      %v1021 = vpack.c.b16 %v1011, %v1011
      %v1023 = vshrl.u32 %v1012, 16
      %v1025 = vrot.slane %v1023, 7
      %v1026 = vshll.u32 %v1012, 16
      %v1028 = vor.u32 %v1025, %v1026
      %v1029 = vrot.slane %v1025, 4
      %v1031 = vshrl.u32 %v1013, 16
      %v1033 = vrot.slane %v1031, 7
      %v1034 = vshll.u32 %v1013, 16
      %v1036 = vor.u32 %v1033, %v1034
      %v1037 = vrot.slane %v1033, 4
      %v1039 = vshrl.u32 %v1014, 16
      %v1041 = vrot.slane %v1039, 7
      %v1042 = vshll.u32 %v1014, 16
      %v1044 = vor.u32 %v1041, %v1042
      %v1045 = vrot.slane %v1041, 4
      %v1047 = vshrl.u32 %v1015, 16
      %v1049 = vrot.slane %v1047, 7
      %v1050 = vshll.u32 %v1015, 16
      %v1052 = vor.u32 %v1049, %v1050
      %v1053 = vrot.slane %v1049, 4
      %v1055 = vshrl.u32 %v1016, 16
      %v1057 = vrot.slane %v1055, 7
      %v1058 = vshll.u32 %v1016, 16
      %v1060 = vor.u32 %v1057, %v1058
      %v1061 = vrot.slane %v1057, 4
      %v1063 = vshrl.u32 %v1017, 16
      %v1065 = vrot.slane %v1063, 7
      %v1066 = vshll.u32 %v1017, 16
      %v1068 = vor.u32 %v1065, %v1066
      %v1069 = vrot.slane %v1065, 4
      %v1071 = vshrl.u32 %v1018, 16
      %v1073 = vrot.slane %v1071, 7
      %v1074 = vshll.u32 %v1018, 16
      %v1076 = vor.u32 %v1073, %v1074
      %v1077 = vrot.slane %v1073, 4
      %v1079 = vshrl.u32 %v1019, 16
      %v1081 = vrot.slane %v1079, 7
      %v1082 = vshll.u32 %v1019, 16
      %v1084 = vor.u32 %v1081, %v1082
      %v1085 = vrot.slane %v1081, 4
      %v1087 = vshrl.u32 %v1020, 16
      %v1089 = vrot.slane %v1087, 7
      %v1090 = vshll.u32 %v1020, 16
      %v1092 = vor.u32 %v1089, %v1090
      %v1093 = vrot.slane %v1089, 4
      %v1095 = vshrl.u32 %v1021, 16
      %v1097 = vrot.slane %v1095, 7
      %v1098 = vshll.u32 %v1021, 16
      %v1100 = vor.u32 %v1097, %v1098
      %v1101 = vrot.slane %v1097, 4
      %vm1122 = vcmask 1043456
      %vm1123 = vsmask.f32 7938
      %vm1124 = vmand %vm1122, %vm1123
      %v1125 = vld [vmem:[#allocation2] sm:$0xf]
      %v1126 = vsel %vm1124, %v1028, %v1125
      %1127 = vst [vmem:[#allocation2] sm:$0xf] %v1126
      %vm1128 = vcmask 1040384
      %vm1129 = vsmask.f32 256
      %vm1130 = vmand %vm1128, %vm1129
      %v1131 = vld [vmem:[#allocation2 + $0x4] sm:$0x1]
      %v1132 = vsel %vm1130, %v1029, %v1131
      %1133 = vst [vmem:[#allocation2 + $0x4] sm:$0x1] %v1132
      %v1134 = vld [vmem:[#allocation2 + $0x8] sm:$0xf]
      %v1135 = vsel %vm1124, %v1036, %v1134
      %1136 = vst [vmem:[#allocation2 + $0x8] sm:$0xf] %v1135
      %v1137 = vld [vmem:[#allocation2 + $0xc] sm:$0x1]
      %v1138 = vsel %vm1130, %v1037, %v1137
      %1139 = vst [vmem:[#allocation2 + $0xc] sm:$0x1] %v1138
      %v1140 = vld [vmem:[#allocation2 + $0x10] sm:$0xf]
      %v1141 = vsel %vm1124, %v1044, %v1140
      %1142 = vst [vmem:[#allocation2 + $0x10] sm:$0xf] %v1141
      %v1143 = vld [vmem:[#allocation2 + $0x14] sm:$0x1]
      %v1144 = vsel %vm1130, %v1045, %v1143
      %1145 = vst [vmem:[#allocation2 + $0x14] sm:$0x1] %v1144
      %v1146 = vld [vmem:[#allocation2 + $0x18] sm:$0xf]
      %v1147 = vsel %vm1124, %v1052, %v1146
      %1148 = vst [vmem:[#allocation2 + $0x18] sm:$0xf] %v1147
      %v1149 = vld [vmem:[#allocation2 + $0x1c] sm:$0x1]
      %v1150 = vsel %vm1130, %v1053, %v1149
      %1151 = vst [vmem:[#allocation2 + $0x1c] sm:$0x1] %v1150
      %v1152 = vld [vmem:[#allocation2 + $0x20] sm:$0xf]
      %v1153 = vsel %vm1124, %v1060, %v1152
      %1154 = vst [vmem:[#allocation2 + $0x20] sm:$0xf] %v1153
      %v1155 = vld [vmem:[#allocation2 + $0x24] sm:$0x1]
      %v1156 = vsel %vm1130, %v1061, %v1155
      %1157 = vst [vmem:[#allocation2 + $0x24] sm:$0x1] %v1156
      %v1158 = vld [vmem:[#allocation2 + $0x28] sm:$0xf]
      %v1159 = vsel %vm1124, %v1068, %v1158
      %1160 = vst [vmem:[#allocation2 + $0x28] sm:$0xf] %v1159
      %v1161 = vld [vmem:[#allocation2 + $0x2c] sm:$0x1]
      %v1162 = vsel %vm1130, %v1069, %v1161
      %1163 = vst [vmem:[#allocation2 + $0x2c] sm:$0x1] %v1162
      %v1164 = vld [vmem:[#allocation2 + $0x30] sm:$0xf]
      %v1165 = vsel %vm1124, %v1076, %v1164
      %1166 = vst [vmem:[#allocation2 + $0x30] sm:$0xf] %v1165
      %v1167 = vld [vmem:[#allocation2 + $0x34] sm:$0x1]
      %v1168 = vsel %vm1130, %v1077, %v1167
      %1169 = vst [vmem:[#allocation2 + $0x34] sm:$0x1] %v1168
      %v1170 = vld [vmem:[#allocation2 + $0x38] sm:$0xf]
      %v1171 = vsel %vm1124, %v1084, %v1170
      %1172 = vst [vmem:[#allocation2 + $0x38] sm:$0xf] %v1171
      %v1173 = vld [vmem:[#allocation2 + $0x3c] sm:$0x1]
      %v1174 = vsel %vm1130, %v1085, %v1173
      %1175 = vst [vmem:[#allocation2 + $0x3c] sm:$0x1] %v1174
      %v1176 = vld [vmem:[#allocation2 + $0x40] sm:$0xf]
      %v1177 = vsel %vm1124, %v1092, %v1176
      %1178 = vst [vmem:[#allocation2 + $0x40] sm:$0xf] %v1177
      %v1179 = vld [vmem:[#allocation2 + $0x44] sm:$0x1]
      %v1180 = vsel %vm1130, %v1093, %v1179
      %1181 = vst [vmem:[#allocation2 + $0x44] sm:$0x1] %v1180
      %v1182 = vld [vmem:[#allocation2 + $0x48] sm:$0xf]
      %v1183 = vsel %vm1124, %v1100, %v1182
      %1184 = vst [vmem:[#allocation2 + $0x48] sm:$0xf] %v1183
      %v1185 = vld [vmem:[#allocation2 + $0x4c] sm:$0x1]
      %v1186 = vsel %vm1130, %v1101, %v1185
      %1187 = vst [vmem:[#allocation2 + $0x4c] sm:$0x1] %v1186
      %v1188 = vld [vmem:[#allocation2] sm:$0x1]
      %v1189 = vsel %vm1130, 0, %v1188
      %1190 = vst [vmem:[#allocation2] sm:$0x1] %v1189
      %v1191 = vld [vmem:[#allocation2 + $0x8] sm:$0x1]
      %v1192 = vsel %vm1130, 0, %v1191
      %1193 = vst [vmem:[#allocation2 + $0x8] sm:$0x1] %v1192
      %v1194 = vld [vmem:[#allocation2 + $0x10] sm:$0x1]
      %v1195 = vsel %vm1130, 0, %v1194
      %1196 = vst [vmem:[#allocation2 + $0x10] sm:$0x1] %v1195
      %v1197 = vld [vmem:[#allocation2 + $0x18] sm:$0x1]
      %v1198 = vsel %vm1130, 0, %v1197
      %1199 = vst [vmem:[#allocation2 + $0x18] sm:$0x1] %v1198
      %v1200 = vld [vmem:[#allocation2 + $0x20] sm:$0x1]
      %v1201 = vsel %vm1130, 0, %v1200
      %1202 = vst [vmem:[#allocation2 + $0x20] sm:$0x1] %v1201
      %v1203 = vld [vmem:[#allocation2 + $0x28] sm:$0x1]
      %v1204 = vsel %vm1130, 0, %v1203
      %1205 = vst [vmem:[#allocation2 + $0x28] sm:$0x1] %v1204
      %v1206 = vld [vmem:[#allocation2 + $0x30] sm:$0x1]
      %v1207 = vsel %vm1130, 0, %v1206
      %1208 = vst [vmem:[#allocation2 + $0x30] sm:$0x1] %v1207
      %v1209 = vld [vmem:[#allocation2 + $0x38] sm:$0x1]
      %v1210 = vsel %vm1130, 0, %v1209
      %1211 = vst [vmem:[#allocation2 + $0x38] sm:$0x1] %v1210
      %v1212 = vld [vmem:[#allocation2 + $0x40] sm:$0x1]
      %v1213 = vsel %vm1130, 0, %v1212
      %1214 = vst [vmem:[#allocation2 + $0x40] sm:$0x1] %v1213
      %v1215 = vld [vmem:[#allocation2 + $0x48] sm:$0x1]
      %v1216 = vsel %vm1130, 0, %v1215
      %1217 = vst [vmem:[#allocation2 + $0x48] sm:$0x1] %v1216
      %vm1218 = vmand %vm1128, %vm1123
      %v1219 = vld [vmem:[#allocation2 + $0x4] sm:$0x1]
      %v1220 = vsel %vm1218, 0, %v1219
      %1221 = vst [vmem:[#allocation2 + $0x4] sm:$0x1] %v1220
      %v1222 = vld [vmem:[#allocation2 + $0xc] sm:$0x1]
      %v1223 = vsel %vm1218, 0, %v1222
      %1224 = vst [vmem:[#allocation2 + $0xc] sm:$0x1] %v1223
      %v1225 = vld [vmem:[#allocation2 + $0x14] sm:$0x1]
      %v1226 = vsel %vm1218, 0, %v1225
      %1227 = vst [vmem:[#allocation2 + $0x14] sm:$0x1] %v1226
      %v1228 = vld [vmem:[#allocation2 + $0x1c] sm:$0x1]
      %v1229 = vsel %vm1218, 0, %v1228
      %1230 = vst [vmem:[#allocation2 + $0x1c] sm:$0x1] %v1229
      %v1231 = vld [vmem:[#allocation2 + $0x24] sm:$0x1]
      %v1232 = vsel %vm1218, 0, %v1231
      %1233 = vst [vmem:[#allocation2 + $0x24] sm:$0x1] %v1232
      %v1234 = vld [vmem:[#allocation2 + $0x2c] sm:$0x1]
      %v1235 = vsel %vm1218, 0, %v1234
      %1236 = vst [vmem:[#allocation2 + $0x2c] sm:$0x1] %v1235
      %v1237 = vld [vmem:[#allocation2 + $0x34] sm:$0x1]
      %v1238 = vsel %vm1218, 0, %v1237
      %1239 = vst [vmem:[#allocation2 + $0x34] sm:$0x1] %v1238
      %v1240 = vld [vmem:[#allocation2 + $0x3c] sm:$0x1]
      %v1241 = vsel %vm1218, 0, %v1240
      %1242 = vst [vmem:[#allocation2 + $0x3c] sm:$0x1] %v1241
      %v1243 = vld [vmem:[#allocation2 + $0x44] sm:$0x1]
      %v1244 = vsel %vm1218, 0, %v1243
      %1245 = vst [vmem:[#allocation2 + $0x44] sm:$0x1] %v1244
      %v1246 = vld [vmem:[#allocation2 + $0x4c] sm:$0x1]
      %v1247 = vsel %vm1218, 0, %v1246
      %1248 = vst [vmem:[#allocation2 + $0x4c] sm:$0x1] %v1247
      %p1249 = scmp.eq.s32.totalorder %s23, 0
      // Predicated region
      $region49: #{down_forward.1} parent=47 // pred_check
        %p1250 = pneg %p1249
      $region50: #{down_forward.1} parent=47 // pred_check_branch
        %1252 = sbr.rel (%p1250) target = $region52
      $region51: #{down_forward.1} parent=47 // pred_region
        %1253 = vst [vmem:[#allocation2] sm:$0xf] 0
        %1254 = vst [vmem:[#allocation2 + $0x4] sm:$0x1] 0
        %s1255 = scalar_lea.vmem [#allocation2], 72
        %1256 = vst [vmem:[%s1255] sm:$0xf] 0
        %1257 = vst [vmem:[%s1255 + $0x4] sm:$0x1] 0
      $region52: #{down_forward.1} parent=47 // pred_fallthru
        _
      %v1258 = vld [vmem:[#allocation2] sm:$0xf]
      %v1259 = vld [vmem:[#allocation2 + $0x4] sm:$0x1]
      %v1260 = vld [vmem:[#allocation2 + $0x8] sm:$0xf]
      %v1261 = vld [vmem:[#allocation2 + $0xc] sm:$0x1]
      %v1262 = vld [vmem:[#allocation2 + $0x10] sm:$0xf]
      %v1263 = vld [vmem:[#allocation2 + $0x14] sm:$0x1]
      %v1264 = vld [vmem:[#allocation2 + $0x18] sm:$0xf]
      %v1265 = vld [vmem:[#allocation2 + $0x1c] sm:$0x1]
      %v1266 = vld [vmem:[#allocation2 + $0x20] sm:$0xf]
      %v1267 = vld [vmem:[#allocation2 + $0x24] sm:$0x1]
      %v1268 = vld [vmem:[#allocation2 + $0x28] sm:$0xf]
      %v1269 = vld [vmem:[#allocation2 + $0x2c] sm:$0x1]
      %v1270 = vld [vmem:[#allocation2 + $0x30] sm:$0xf]
      %v1271 = vld [vmem:[#allocation2 + $0x34] sm:$0x1]
      %v1272 = vld [vmem:[#allocation2 + $0x38] sm:$0xf]
      %v1273 = vld [vmem:[#allocation2 + $0x3c] sm:$0x1]
      %v1274 = vld [vmem:[#allocation2 + $0x40] sm:$0xf]
      %v1275 = vld [vmem:[#allocation2 + $0x44] sm:$0x1]
      %v1276 = vld [vmem:[#allocation2 + $0x48] sm:$0xf]
      %v1277 = vld [vmem:[#allocation2 + $0x4c] sm:$0x1]
      %v1298 = vunpack.c.l.b16 %v1258
      %v1299 = vunpack.c.l.b16 %v1259
      %v1300 = vunpack.c.l.b16 %v1260
      %v1301 = vunpack.c.l.b16 %v1261
      %v1302 = vunpack.c.l.b16 %v1262
      %v1303 = vunpack.c.l.b16 %v1263
      %v1304 = vunpack.c.l.b16 %v1264
      %v1305 = vunpack.c.l.b16 %v1265
      %v1306 = vunpack.c.l.b16 %v1266
      %v1307 = vunpack.c.l.b16 %v1267
      %v1308 = vunpack.c.l.b16 %v1268
      %v1309 = vunpack.c.l.b16 %v1269
      %v1310 = vunpack.c.l.b16 %v1270
      %v1311 = vunpack.c.l.b16 %v1271
      %v1312 = vunpack.c.l.b16 %v1272
      %v1313 = vunpack.c.l.b16 %v1273
      %v1314 = vunpack.c.l.b16 %v1274
      %v1315 = vunpack.c.l.b16 %v1275
      %v1316 = vunpack.c.l.b16 %v1276
      %v1317 = vunpack.c.l.b16 %v1277
      %v1318 = vpack.c.b16 %v1299, %v1298
      %v1319 = vpack.c.b16 %v1301, %v1300
      %v1320 = vpack.c.b16 %v1303, %v1302
      %v1321 = vpack.c.b16 %v1305, %v1304
      %v1322 = vpack.c.b16 %v1307, %v1306
      %v1323 = vpack.c.b16 %v1309, %v1308
      %v1324 = vpack.c.b16 %v1311, %v1310
      %v1325 = vpack.c.b16 %v1313, %v1312
      %v1326 = vpack.c.b16 %v1315, %v1314
      %v1327 = vpack.c.b16 %v1317, %v1316
      %v1329 = vshrl.u32 %v1318, 16
      %v1331 = vshll.u32 %v1318, 16
      %v1333 = vrot.slane %v1331, 1
      %v1334 = vor.u32 %v1329, %v1333
      %v1336 = vshrl.u32 %v1319, 16
      %v1338 = vshll.u32 %v1319, 16
      %v1340 = vrot.slane %v1338, 1
      %v1341 = vor.u32 %v1336, %v1340
      %v1343 = vshrl.u32 %v1320, 16
      %v1345 = vshll.u32 %v1320, 16
      %v1347 = vrot.slane %v1345, 1
      %v1348 = vor.u32 %v1343, %v1347
      %v1350 = vshrl.u32 %v1321, 16
      %v1352 = vshll.u32 %v1321, 16
      %v1354 = vrot.slane %v1352, 1
      %v1355 = vor.u32 %v1350, %v1354
      %v1357 = vshrl.u32 %v1322, 16
      %v1359 = vshll.u32 %v1322, 16
      %v1361 = vrot.slane %v1359, 1
      %v1362 = vor.u32 %v1357, %v1361
      %v1364 = vshrl.u32 %v1323, 16
      %v1366 = vshll.u32 %v1323, 16
      %v1368 = vrot.slane %v1366, 1
      %v1369 = vor.u32 %v1364, %v1368
      %v1371 = vshrl.u32 %v1324, 16
      %v1373 = vshll.u32 %v1324, 16
      %v1375 = vrot.slane %v1373, 1
      %v1376 = vor.u32 %v1371, %v1375
      %v1378 = vshrl.u32 %v1325, 16
      %v1380 = vshll.u32 %v1325, 16
      %v1382 = vrot.slane %v1380, 1
      %v1383 = vor.u32 %v1378, %v1382
      %v1385 = vshrl.u32 %v1326, 16
      %v1387 = vshll.u32 %v1326, 16
      %v1389 = vrot.slane %v1387, 1
      %v1390 = vor.u32 %v1385, %v1389
      %v1392 = vshrl.u32 %v1327, 16
      %v1394 = vshll.u32 %v1327, 16
      %v1396 = vrot.slane %v1394, 1
      %v1397 = vor.u32 %v1392, %v1396
      %v1398 = vrot.slane %v1318, 1
      %v1399 = vrot.slane %v1319, 1
      %v1400 = vrot.slane %v1320, 1
      %v1401 = vrot.slane %v1321, 1
      %v1402 = vrot.slane %v1322, 1
      %v1403 = vrot.slane %v1323, 1
      %v1404 = vrot.slane %v1324, 1
      %v1405 = vrot.slane %v1325, 1
      %v1406 = vrot.slane %v1326, 1
      %v1407 = vrot.slane %v1327, 1
      %v1408 = vunpack.c.l.b16 %v1334
      %v1409 = vunpack.c.l.b16 %v1398
      %v1410 = vunpack.c.l.b16 %v1341
      %v1411 = vunpack.c.l.b16 %v1399
      %v1412 = vunpack.c.l.b16 %v1348
      %v1413 = vunpack.c.l.b16 %v1400
      %v1414 = vunpack.c.l.b16 %v1355
      %v1415 = vunpack.c.l.b16 %v1401
      %v1416 = vunpack.c.l.b16 %v1362
      %v1417 = vunpack.c.l.b16 %v1402
      %v1418 = vunpack.c.l.b16 %v1369
      %v1419 = vunpack.c.l.b16 %v1403
      %v1420 = vunpack.c.l.b16 %v1376
      %v1421 = vunpack.c.l.b16 %v1404
      %v1422 = vunpack.c.l.b16 %v1383
      %v1423 = vunpack.c.l.b16 %v1405
      %v1424 = vld [vmem:[%s4] sm:$0xf]
      %v1425 = vld [vmem:[%s4 + $0x4] sm:$0xf]
      %v1426 = vld [vmem:[%s4 + $0x8] sm:$0xf]
      %v1427 = vld [vmem:[%s4 + $0xc] sm:$0xf]
      %v1428 = vld [vmem:[%s4 + $0x10] sm:$0xf]
      %v1429 = vld [vmem:[%s4 + $0x14] sm:$0xf]
      %v1430 = vld [vmem:[%s4 + $0x18] sm:$0xf]
      %v1431 = vld [vmem:[%s4 + $0x1c] sm:$0xf]
      %v1432 = vld [vmem:[%s4 + $0x20] sm:$0xf]
      %v1433 = vld [vmem:[%s4 + $0x24] sm:$0xf]
      %v1434 = vld [vmem:[%s4 + $0x28] sm:$0xf]
      %v1435 = vld [vmem:[%s4 + $0x2c] sm:$0xf]
      %v1436 = vld [vmem:[%s4 + $0x30] sm:$0xf]
      %v1437 = vld [vmem:[%s4 + $0x34] sm:$0xf]
      %v1438 = vld [vmem:[%s4 + $0x38] sm:$0xf]
      %v1439 = vld [vmem:[%s4 + $0x3c] sm:$0xf]
      %v1440 = vld [vmem:[%s4 + $0x40] sm:$0xf]
      %v1441 = vld [vmem:[%s4 + $0x44] sm:$0xf]
      %v1442 = vld [vmem:[%s4 + $0x48] sm:$0xf]
      %v1443 = vld [vmem:[%s4 + $0x4c] sm:$0xf]
      %v1444 = vld [vmem:[%s4 + $0x50] sm:$0xf]
      %v1445 = vld [vmem:[%s4 + $0x54] sm:$0xf]
      %v1446 = vld [vmem:[%s4 + $0x58] sm:$0xf]
      %v1447 = vld [vmem:[%s4 + $0x5c] sm:$0xf]
      %v1448 = vld [vmem:[%s4 + $0x60] sm:$0xf]
      %v1449 = vld [vmem:[%s4 + $0x64] sm:$0xf]
      %v1450 = vld [vmem:[%s4 + $0x68] sm:$0xf]
      %v1451 = vld [vmem:[%s4 + $0x6c] sm:$0xf]
      %v1452 = vld [vmem:[%s4 + $0x70] sm:$0xf]
      %v1453 = vld [vmem:[%s4 + $0x74] sm:$0xf]
      %v1454 = vld [vmem:[%s4 + $0x78] sm:$0xf]
      %v1455 = vld [vmem:[%s4 + $0x7c] sm:$0xf]
      %v1456 = vld [vmem:[%s4 + $0x80] sm:$0xf]
      %v1457 = vld [vmem:[%s4 + $0x84] sm:$0xf]
      %v1458 = vld [vmem:[%s4 + $0x88] sm:$0xf]
      %v1459 = vld [vmem:[%s4 + $0x8c] sm:$0xf]
      %v1460 = vld [vmem:[%s4 + $0x90] sm:$0xf]
      %v1461 = vld [vmem:[%s4 + $0x94] sm:$0xf]
      %v1462 = vld [vmem:[%s4 + $0x98] sm:$0xf]
      %v1463 = vld [vmem:[%s4 + $0x9c] sm:$0xf]
      %v1464 = vld [vmem:[%s4 + $0xa0] sm:$0xf]
      %v1465 = vld [vmem:[%s4 + $0xa4] sm:$0xf]
      %v1466 = vld [vmem:[%s4 + $0xa8] sm:$0xf]
      %v1467 = vld [vmem:[%s4 + $0xac] sm:$0xf]
      %v1468 = vld [vmem:[%s4 + $0xb0] sm:$0xf]
      %v1469 = vld [vmem:[%s4 + $0xb4] sm:$0xf]
      %v1470 = vld [vmem:[%s4 + $0xb8] sm:$0xf]
      %v1471 = vld [vmem:[%s4 + $0xbc] sm:$0xf]
      %v1472 = vunpack.c.l.b16 %v1390
      %v1473 = vunpack.c.l.b16 %v1406
      %s1474 = scalar_lea.vmem %s4, 192
      %v1475 = vld [vmem:[%s1474] sm:$0xf]
      %v1476 = vld [vmem:[%s1474 + $0x4] sm:$0xf]
      %v1477 = vld [vmem:[%s1474 + $0x8] sm:$0xf]
      %v1478 = vld [vmem:[%s1474 + $0xc] sm:$0xf]
      %v1479 = vld [vmem:[%s1474 + $0x10] sm:$0xf]
      %v1480 = vld [vmem:[%s1474 + $0x14] sm:$0xf]
      %v1481 = vld [vmem:[%s1474 + $0x18] sm:$0xf]
      %v1482 = vld [vmem:[%s1474 + $0x1c] sm:$0xf]
      %v1483 = vld [vmem:[%s1474 + $0x20] sm:$0xf]
      %v1484 = vld [vmem:[%s1474 + $0x24] sm:$0xf]
      %v1485 = vld [vmem:[%s1474 + $0x28] sm:$0xf]
      %v1486 = vld [vmem:[%s1474 + $0x2c] sm:$0xf]
      %v1487 = vld [vmem:[%s1474 + $0x30] sm:$0xf]
      %v1488 = vld [vmem:[%s1474 + $0x34] sm:$0xf]
      %v1489 = vld [vmem:[%s1474 + $0x38] sm:$0xf]
      %v1490 = vld [vmem:[%s1474 + $0x3c] sm:$0xf]
      %v1491 = vld [vmem:[%s1474 + $0x40] sm:$0xf]
      %v1492 = vld [vmem:[%s1474 + $0x44] sm:$0xf]
      %v1493 = vld [vmem:[%s1474 + $0x48] sm:$0xf]
      %v1494 = vld [vmem:[%s1474 + $0x4c] sm:$0xf]
      %v1495 = vld [vmem:[%s1474 + $0x50] sm:$0xf]
      %v1496 = vld [vmem:[%s1474 + $0x54] sm:$0xf]
      %v1497 = vld [vmem:[%s1474 + $0x58] sm:$0xf]
      %v1498 = vld [vmem:[%s1474 + $0x5c] sm:$0xf]
      %v1499 = vld [vmem:[%s1474 + $0x60] sm:$0xf]
      %v1500 = vld [vmem:[%s1474 + $0x64] sm:$0xf]
      %v1501 = vld [vmem:[%s1474 + $0x68] sm:$0xf]
      %v1502 = vld [vmem:[%s1474 + $0x6c] sm:$0xf]
      %v1503 = vld [vmem:[%s1474 + $0x70] sm:$0xf]
      %v1504 = vld [vmem:[%s1474 + $0x74] sm:$0xf]
      %v1505 = vld [vmem:[%s1474 + $0x78] sm:$0xf]
      %v1506 = vld [vmem:[%s1474 + $0x7c] sm:$0xf]
      %v1507 = vld [vmem:[%s1474 + $0x80] sm:$0xf]
      %v1508 = vld [vmem:[%s1474 + $0x84] sm:$0xf]
      %v1509 = vld [vmem:[%s1474 + $0x88] sm:$0xf]
      %v1510 = vld [vmem:[%s1474 + $0x8c] sm:$0xf]
      %v1511 = vld [vmem:[%s1474 + $0x90] sm:$0xf]
      %v1512 = vld [vmem:[%s1474 + $0x94] sm:$0xf]
      %v1513 = vld [vmem:[%s1474 + $0x98] sm:$0xf]
      %v1514 = vld [vmem:[%s1474 + $0x9c] sm:$0xf]
      %v1515 = vld [vmem:[%s1474 + $0xa0] sm:$0xf]
      %v1516 = vld [vmem:[%s1474 + $0xa4] sm:$0xf]
      %v1517 = vld [vmem:[%s1474 + $0xa8] sm:$0xf]
      %v1518 = vld [vmem:[%s1474 + $0xac] sm:$0xf]
      %v1519 = vld [vmem:[%s1474 + $0xb0] sm:$0xf]
      %v1520 = vld [vmem:[%s1474 + $0xb4] sm:$0xf]
      %v1521 = vld [vmem:[%s1474 + $0xb8] sm:$0xf]
      %v1522 = vld [vmem:[%s1474 + $0xbc] sm:$0xf]
      %v1523 = vpack.c.b16 %v1302, %v1300
      %v1524 = vpack.c.b16 %v1412, %v1410
      %v1525 = vpack.c.b16 %v1413, %v1411
      %v1526 = vpack.c.b16 %v1306, %v1304
      %v1527 = vpack.c.b16 %v1416, %v1414
      %v1528 = vpack.c.b16 %v1417, %v1415
      %v1529 = vpack.c.b16 %v1310, %v1308
      %v1530 = vpack.c.b16 %v1420, %v1418
      %v1531 = vpack.c.b16 %v1421, %v1419
      %v1532 = vpack.c.b16 %v1314, %v1312
      %v1533 = vpack.c.b16 %v1472, %v1422
      %v1534 = vpack.c.b16 %v1473, %v1423
      %v1595 = vunpack.c.l.b16 %v1475
      %v1596 = vunpack.c.l.b16 %v1476
      %v1597 = vunpack.c.l.b16 %v1477
      %v1598 = vunpack.c.l.b16 %v1478
      %v1599 = vunpack.c.l.b16 %v1479
      %v1600 = vunpack.c.l.b16 %v1480
      %v1601 = vunpack.c.l.b16 %v1481
      %v1602 = vunpack.c.l.b16 %v1482
      %v1603 = vunpack.c.l.b16 %v1483
      %v1604 = vunpack.c.l.b16 %v1484
      %v1605 = vunpack.c.l.b16 %v1485
      %v1606 = vunpack.c.l.b16 %v1486
      %v1607 = vunpack.c.l.b16 %v1487
      %v1608 = vunpack.c.l.b16 %v1488
      %v1609 = vunpack.c.l.b16 %v1489
      %v1610 = vunpack.c.l.b16 %v1490
      %v1611 = vunpack.c.l.b16 %v1491
      %v1612 = vunpack.c.l.b16 %v1492
      %v1613 = vunpack.c.l.b16 %v1493
      %v1614 = vunpack.c.l.b16 %v1494
      %v1615 = vunpack.c.l.b16 %v1495
      %v1616 = vunpack.c.l.b16 %v1496
      %v1617 = vunpack.c.l.b16 %v1497
      %v1618 = vunpack.c.l.b16 %v1498
      %v1619 = vunpack.c.l.b16 %v1499
      %v1620 = vunpack.c.l.b16 %v1500
      %v1621 = vunpack.c.l.b16 %v1501
      %v1622 = vunpack.c.l.b16 %v1502
      %v1623 = vunpack.c.l.b16 %v1503
      %v1624 = vunpack.c.l.b16 %v1504
      %v1625 = vunpack.c.l.b16 %v1505
      %v1626 = vunpack.c.l.b16 %v1506
      %v1627 = vunpack.c.l.b16 %v1507
      %v1628 = vunpack.c.l.b16 %v1508
      %v1629 = vunpack.c.l.b16 %v1509
      %v1630 = vunpack.c.l.b16 %v1510
      %v1631 = vunpack.c.l.b16 %v1511
      %v1632 = vunpack.c.l.b16 %v1512
      %v1633 = vunpack.c.l.b16 %v1513
      %v1634 = vunpack.c.l.b16 %v1514
      %v1635 = vunpack.c.l.b16 %v1515
      %v1636 = vunpack.c.l.b16 %v1516
      %v1637 = vunpack.c.l.b16 %v1517
      %v1638 = vunpack.c.l.b16 %v1518
      %v1639 = vunpack.c.l.b16 %v1519
      %v1640 = vunpack.c.l.b16 %v1520
      %v1641 = vunpack.c.l.b16 %v1521
      %v1642 = vunpack.c.l.b16 %v1522
      %v1643 = vpack.c.b16 %v1596, %v1595
      %v1644 = vpack.c.b16 %v1598, %v1597
      %v1645 = vpack.c.b16 %v1600, %v1599
      %v1646 = vpack.c.b16 %v1602, %v1601
      %v1647 = vpack.c.b16 %v1604, %v1603
      %v1648 = vpack.c.b16 %v1606, %v1605
      %v1649 = vpack.c.b16 %v1608, %v1607
      %v1650 = vpack.c.b16 %v1610, %v1609
      %v1651 = vpack.c.b16 %v1612, %v1611
      %v1652 = vpack.c.b16 %v1614, %v1613
      %v1653 = vpack.c.b16 %v1616, %v1615
      %v1654 = vpack.c.b16 %v1618, %v1617
      %v1655 = vpack.c.b16 %v1620, %v1619
      %v1656 = vpack.c.b16 %v1622, %v1621
      %v1657 = vpack.c.b16 %v1624, %v1623
      %v1658 = vpack.c.b16 %v1626, %v1625
      %v1659 = vpack.c.b16 %v1628, %v1627
      %v1660 = vpack.c.b16 %v1630, %v1629
      %v1661 = vpack.c.b16 %v1632, %v1631
      %v1662 = vpack.c.b16 %v1634, %v1633
      %v1663 = vpack.c.b16 %v1636, %v1635
      %v1664 = vpack.c.b16 %v1638, %v1637
      %v1665 = vpack.c.b16 %v1640, %v1639
      %v1666 = vpack.c.b16 %v1642, %v1641
      %1691 = vmatprep.subr.bf16.mxu0 0
      %1692 = vmatpush1.bf16.msra.mxu0 %v1650
      %1693 = vmatprep.subr.bf16.mxu0 0
      %1694 = vmatpush1.bf16.msra.mxu0 %v1649
      %1695 = vmatprep.subr.bf16.mxu0 0
      %1696 = vmatpush1.bf16.msra.mxu0 %v1648
      %1697 = vmatprep.subr.bf16.mxu0 0
      %1698 = vmatpush1.bf16.msra.mxu0 %v1647
      %1699 = vmatprep.subr.bf16.mxu0 0
      %1700 = vmatpush1.bf16.msra.mxu0 %v1646
      %1701 = vmatprep.subr.bf16.mxu0 0
      %1702 = vmatpush1.bf16.msra.mxu0 %v1645
      %1703 = vmatprep.subr.bf16.mxu0 0
      %1704 = vmatpush1.bf16.msra.mxu0 %v1644
      %1705 = vmatprep.subr.bf16.mxu0 0
      %1706 = vmatpush1.bf16.msra.mxu0 %v1643
      %1707 = vmatprep.subr.bf16.mxu0 0
      %1708 = vmatpush2.bf16.msra.mxu0 %v1658
      %1709 = vmatprep.subr.bf16.mxu0 0
      %1710 = vmatpush2.bf16.msra.mxu0 %v1657
      %1711 = vmatprep.subr.bf16.mxu0 0
      %1712 = vmatpush2.bf16.msra.mxu0 %v1656
      %1713 = vmatprep.subr.bf16.mxu0 0
      %1714 = vmatpush2.bf16.msra.mxu0 %v1655
      %1715 = vmatprep.subr.bf16.mxu0 0
      %1716 = vmatpush2.bf16.msra.mxu0 %v1654
      %1717 = vmatprep.subr.bf16.mxu0 0
      %1718 = vmatpush2.bf16.msra.mxu0 %v1653
      %1719 = vmatprep.subr.bf16.mxu0 0
      %1720 = vmatpush2.bf16.msra.mxu0 %v1652
      %1721 = vmatprep.subr.bf16.mxu0 0
      %1722 = vmatpush2.bf16.msra.mxu0 %v1651
      %1723 = vmatprep.mubr.bf16.mxu0 %v1524
      %1724 = vmatmul.mubr.bf16.gmra.mxu0 %v1523
      %v1725 = vpop.f32.mrf.mxu0
      %v1726 = vadd.f32 0.0, %v1725
      %v1727 = vpop.f32.mrf.mxu0
      %v1728 = vpop.f32.mrf.mxu0
      %v1729 = vadd.f32 0.0, %v1728
      %v1730 = vpop.f32.mrf.mxu0
      %1731 = vmatprep.mubr.bf16.mxu0 %v1527
      %1732 = vmatmul.mubr.bf16.gmra.mxu0 %v1526
      %v1733 = vpop.f32.mrf.mxu0
      %v1734 = vadd.f32 0.0, %v1733
      %v1735 = vpop.f32.mrf.mxu0
      %v1736 = vpop.f32.mrf.mxu0
      %v1737 = vadd.f32 0.0, %v1736
      %v1738 = vpop.f32.mrf.mxu0
      %1739 = vmatprep.mubr.bf16.mxu0 %v1530
      %1740 = vmatmul.mubr.bf16.gmra.mxu0 %v1529
      %v1741 = vpop.f32.mrf.mxu0
      %v1742 = vadd.f32 0.0, %v1741
      %v1743 = vpop.f32.mrf.mxu0
      %v1744 = vpop.f32.mrf.mxu0
      %v1745 = vadd.f32 0.0, %v1744
      %v1746 = vpop.f32.mrf.mxu0
      %1747 = vmatprep.mubr.bf16.mxu0 %v1533
      %1748 = vmatmul.mubr.bf16.gmra.mxu0 %v1532
      %v1749 = vpop.f32.mrf.mxu0
      %v1750 = vadd.f32 0.0, %v1749
      %v1751 = vpop.f32.mrf.mxu0
      %v1752 = vpop.f32.mrf.mxu0
      %v1753 = vadd.f32 0.0, %v1752
      %v1754 = vpop.f32.mrf.mxu0
      %1755 = vdwg.mxu0
      %1756 = vmatprep.subr.bf16.mxu0 0
      %1757 = vmatpush1.bf16.msra.mxu0 %v1666
      %1758 = vmatprep.subr.bf16.mxu0 0
      %1759 = vmatpush1.bf16.msra.mxu0 %v1665
      %1760 = vmatprep.subr.bf16.mxu0 0
      %1761 = vmatpush1.bf16.msra.mxu0 %v1664
      %1762 = vmatprep.subr.bf16.mxu0 0
      %1763 = vmatpush1.bf16.msra.mxu0 %v1663
      %1764 = vmatprep.subr.bf16.mxu0 0
      %1765 = vmatpush1.bf16.msra.mxu0 %v1662
      %1766 = vmatprep.subr.bf16.mxu0 0
      %1767 = vmatpush1.bf16.msra.mxu0 %v1661
      %1768 = vmatprep.subr.bf16.mxu0 0
      %1769 = vmatpush1.bf16.msra.mxu0 %v1660
      %1770 = vmatprep.subr.bf16.mxu0 0
      %1771 = vmatpush1.bf16.msra.mxu0 %v1659
      %1772 = vmatprep.subr.bf16.mxu0 0
      %1773 = vmatpush2.bf16.msra.mxu0 0
      %1774 = vmatprep.subr.bf16.mxu0 0
      %1775 = vmatpush2.bf16.msra.mxu0 0
      %1776 = vmatprep.subr.bf16.mxu0 0
      %1777 = vmatpush2.bf16.msra.mxu0 0
      %1778 = vmatprep.subr.bf16.mxu0 0
      %1779 = vmatpush2.bf16.msra.mxu0 0
      %1780 = vmatprep.subr.bf16.mxu0 0
      %1781 = vmatpush2.bf16.msra.mxu0 0
      %1782 = vmatprep.subr.bf16.mxu0 0
      %1783 = vmatpush2.bf16.msra.mxu0 0
      %1784 = vmatprep.subr.bf16.mxu0 0
      %1785 = vmatpush2.bf16.msra.mxu0 0
      %1786 = vmatprep.subr.bf16.mxu0 0
      %1787 = vmatpush2.bf16.msra.mxu0 0
      %1788 = vmatprep.mubr.bf16.mxu0 0
      %1789 = vmatmul.mubr.bf16.gmra.mxu0 %v1525
      %v1790 = vpop.f32.mrf.mxu0
      %v1791 = vadd.f32 %v1726, %v1790
      %v1792 = vpop.f32.mrf.mxu0
      %v1793 = vpop.f32.mrf.mxu0
      %v1794 = vadd.f32 %v1729, %v1793
      %v1795 = vpop.f32.mrf.mxu0
      %1796 = vmatprep.mubr.bf16.mxu0 0
      %1797 = vmatmul.mubr.bf16.gmra.mxu0 %v1528
      %v1798 = vpop.f32.mrf.mxu0
      %v1799 = vadd.f32 %v1734, %v1798
      %v1800 = vpop.f32.mrf.mxu0
      %v1801 = vpop.f32.mrf.mxu0
      %v1802 = vadd.f32 %v1737, %v1801
      %v1803 = vpop.f32.mrf.mxu0
      %1804 = vmatprep.mubr.bf16.mxu0 0
      %1805 = vmatmul.mubr.bf16.gmra.mxu0 %v1531
      %v1806 = vpop.f32.mrf.mxu0
      %v1807 = vadd.f32 %v1742, %v1806
      %v1808 = vpop.f32.mrf.mxu0
      %v1809 = vpop.f32.mrf.mxu0
      %v1810 = vadd.f32 %v1745, %v1809
      %v1811 = vpop.f32.mrf.mxu0
      %1812 = vmatprep.mubr.bf16.mxu0 0
      %1813 = vmatmul.mubr.bf16.gmra.mxu0 %v1534
      %v1814 = vpop.f32.mrf.mxu0
      %v1815 = vadd.f32 %v1750, %v1814
      %v1816 = vpop.f32.mrf.mxu0
      %v1817 = vpop.f32.mrf.mxu0
      %v1818 = vadd.f32 %v1753, %v1817
      %v1819 = vpop.f32.mrf.mxu0
      %1820 = vdwg.mxu0
      %v1821 = vpack.c.b16 %v1300, %v1298
      %v1822 = vpack.c.b16 %v1410, %v1408
      %v1823 = vpack.c.b16 %v1411, %v1409
      %v1824 = vpack.c.b16 %v1304, %v1302
      %v1825 = vpack.c.b16 %v1414, %v1412
      %v1826 = vpack.c.b16 %v1415, %v1413
      %v1827 = vpack.c.b16 %v1308, %v1306
      %v1828 = vpack.c.b16 %v1418, %v1416
      %v1829 = vpack.c.b16 %v1419, %v1417
      %v1830 = vpack.c.b16 %v1312, %v1310
      %v1831 = vpack.c.b16 %v1422, %v1420
      %v1832 = vpack.c.b16 %v1423, %v1421
      %v1893 = vunpack.c.l.b16 %v1424
      %v1894 = vunpack.c.l.b16 %v1425
      %v1895 = vunpack.c.l.b16 %v1426
      %v1896 = vunpack.c.l.b16 %v1427
      %v1897 = vunpack.c.l.b16 %v1428
      %v1898 = vunpack.c.l.b16 %v1429
      %v1899 = vunpack.c.l.b16 %v1430
      %v1900 = vunpack.c.l.b16 %v1431
      %v1901 = vunpack.c.l.b16 %v1432
      %v1902 = vunpack.c.l.b16 %v1433
      %v1903 = vunpack.c.l.b16 %v1434
      %v1904 = vunpack.c.l.b16 %v1435
      %v1905 = vunpack.c.l.b16 %v1436
      %v1906 = vunpack.c.l.b16 %v1437
      %v1907 = vunpack.c.l.b16 %v1438
      %v1908 = vunpack.c.l.b16 %v1439
      %v1909 = vunpack.c.l.b16 %v1440
      %v1910 = vunpack.c.l.b16 %v1441
      %v1911 = vunpack.c.l.b16 %v1442
      %v1912 = vunpack.c.l.b16 %v1443
      %v1913 = vunpack.c.l.b16 %v1444
      %v1914 = vunpack.c.l.b16 %v1445
      %v1915 = vunpack.c.l.b16 %v1446
      %v1916 = vunpack.c.l.b16 %v1447
      %v1917 = vunpack.c.l.b16 %v1448
      %v1918 = vunpack.c.l.b16 %v1449
      %v1919 = vunpack.c.l.b16 %v1450
      %v1920 = vunpack.c.l.b16 %v1451
      %v1921 = vunpack.c.l.b16 %v1452
      %v1922 = vunpack.c.l.b16 %v1453
      %v1923 = vunpack.c.l.b16 %v1454
      %v1924 = vunpack.c.l.b16 %v1455
      %v1925 = vunpack.c.l.b16 %v1456
      %v1926 = vunpack.c.l.b16 %v1457
      %v1927 = vunpack.c.l.b16 %v1458
      %v1928 = vunpack.c.l.b16 %v1459
      %v1929 = vunpack.c.l.b16 %v1460
      %v1930 = vunpack.c.l.b16 %v1461
      %v1931 = vunpack.c.l.b16 %v1462
      %v1932 = vunpack.c.l.b16 %v1463
      %v1933 = vunpack.c.l.b16 %v1464
      %v1934 = vunpack.c.l.b16 %v1465
      %v1935 = vunpack.c.l.b16 %v1466
      %v1936 = vunpack.c.l.b16 %v1467
      %v1937 = vunpack.c.l.b16 %v1468
      %v1938 = vunpack.c.l.b16 %v1469
      %v1939 = vunpack.c.l.b16 %v1470
      %v1940 = vunpack.c.l.b16 %v1471
      %v1941 = vpack.c.b16 %v1894, %v1893
      %v1942 = vpack.c.b16 %v1896, %v1895
      %v1943 = vpack.c.b16 %v1898, %v1897
      %v1944 = vpack.c.b16 %v1900, %v1899
      %v1945 = vpack.c.b16 %v1902, %v1901
      %v1946 = vpack.c.b16 %v1904, %v1903
      %v1947 = vpack.c.b16 %v1906, %v1905
      %v1948 = vpack.c.b16 %v1908, %v1907
      %v1949 = vpack.c.b16 %v1910, %v1909
      %v1950 = vpack.c.b16 %v1912, %v1911
      %v1951 = vpack.c.b16 %v1914, %v1913
      %v1952 = vpack.c.b16 %v1916, %v1915
      %v1953 = vpack.c.b16 %v1918, %v1917
      %v1954 = vpack.c.b16 %v1920, %v1919
      %v1955 = vpack.c.b16 %v1922, %v1921
      %v1956 = vpack.c.b16 %v1924, %v1923
      %v1957 = vpack.c.b16 %v1926, %v1925
      %v1958 = vpack.c.b16 %v1928, %v1927
      %v1959 = vpack.c.b16 %v1930, %v1929
      %v1960 = vpack.c.b16 %v1932, %v1931
      %v1961 = vpack.c.b16 %v1934, %v1933
      %v1962 = vpack.c.b16 %v1936, %v1935
      %v1963 = vpack.c.b16 %v1938, %v1937
      %v1964 = vpack.c.b16 %v1940, %v1939
      %1989 = vmatprep.subr.bf16.mxu0 0
      %1990 = vmatpush1.bf16.msra.mxu0 %v1948
      %1991 = vmatprep.subr.bf16.mxu0 0
      %1992 = vmatpush1.bf16.msra.mxu0 %v1947
      %1993 = vmatprep.subr.bf16.mxu0 0
      %1994 = vmatpush1.bf16.msra.mxu0 %v1946
      %1995 = vmatprep.subr.bf16.mxu0 0
      %1996 = vmatpush1.bf16.msra.mxu0 %v1945
      %1997 = vmatprep.subr.bf16.mxu0 0
      %1998 = vmatpush1.bf16.msra.mxu0 %v1944
      %1999 = vmatprep.subr.bf16.mxu0 0
      %2000 = vmatpush1.bf16.msra.mxu0 %v1943
      %2001 = vmatprep.subr.bf16.mxu0 0
      %2002 = vmatpush1.bf16.msra.mxu0 %v1942
      %2003 = vmatprep.subr.bf16.mxu0 0
      %2004 = vmatpush1.bf16.msra.mxu0 %v1941
      %2005 = vmatprep.subr.bf16.mxu0 0
      %2006 = vmatpush2.bf16.msra.mxu0 %v1956
      %2007 = vmatprep.subr.bf16.mxu0 0
      %2008 = vmatpush2.bf16.msra.mxu0 %v1955
      %2009 = vmatprep.subr.bf16.mxu0 0
      %2010 = vmatpush2.bf16.msra.mxu0 %v1954
      %2011 = vmatprep.subr.bf16.mxu0 0
      %2012 = vmatpush2.bf16.msra.mxu0 %v1953
      %2013 = vmatprep.subr.bf16.mxu0 0
      %2014 = vmatpush2.bf16.msra.mxu0 %v1952
      %2015 = vmatprep.subr.bf16.mxu0 0
      %2016 = vmatpush2.bf16.msra.mxu0 %v1951
      %2017 = vmatprep.subr.bf16.mxu0 0
      %2018 = vmatpush2.bf16.msra.mxu0 %v1950
      %2019 = vmatprep.subr.bf16.mxu0 0
      %2020 = vmatpush2.bf16.msra.mxu0 %v1949
      %2021 = vmatprep.mubr.bf16.mxu0 %v1822
      %2022 = vmatmul.mubr.bf16.gmra.mxu0 %v1821
      %v2023 = vpop.f32.mrf.mxu0
      %v2024 = vadd.f32 %v1791, %v2023
      %v2025 = vpop.f32.mrf.mxu0
      %v2026 = vpop.f32.mrf.mxu0
      %v2027 = vadd.f32 %v1794, %v2026
      %v2028 = vpop.f32.mrf.mxu0
      %2029 = vmatprep.mubr.bf16.mxu0 %v1825
      %2030 = vmatmul.mubr.bf16.gmra.mxu0 %v1824
      %v2031 = vpop.f32.mrf.mxu0
      %v2032 = vadd.f32 %v1799, %v2031
      %v2033 = vpop.f32.mrf.mxu0
      %v2034 = vpop.f32.mrf.mxu0
      %v2035 = vadd.f32 %v1802, %v2034
      %v2036 = vpop.f32.mrf.mxu0
      %2037 = vmatprep.mubr.bf16.mxu0 %v1828
      %2038 = vmatmul.mubr.bf16.gmra.mxu0 %v1827
      %v2039 = vpop.f32.mrf.mxu0
      %v2040 = vadd.f32 %v1807, %v2039
      %v2041 = vpop.f32.mrf.mxu0
      %v2042 = vpop.f32.mrf.mxu0
      %v2043 = vadd.f32 %v1810, %v2042
      %v2044 = vpop.f32.mrf.mxu0
      %2045 = vmatprep.mubr.bf16.mxu0 %v1831
      %2046 = vmatmul.mubr.bf16.gmra.mxu0 %v1830
      %v2047 = vpop.f32.mrf.mxu0
      %v2048 = vadd.f32 %v1815, %v2047
      %v2049 = vpop.f32.mrf.mxu0
      %v2050 = vpop.f32.mrf.mxu0
      %v2051 = vadd.f32 %v1818, %v2050
      %v2052 = vpop.f32.mrf.mxu0
      %2053 = vdwg.mxu0
      %2054 = vmatprep.subr.bf16.mxu0 0
      %2055 = vmatpush1.bf16.msra.mxu0 %v1964
      %2056 = vmatprep.subr.bf16.mxu0 0
      %2057 = vmatpush1.bf16.msra.mxu0 %v1963
      %2058 = vmatprep.subr.bf16.mxu0 0
      %2059 = vmatpush1.bf16.msra.mxu0 %v1962
      %2060 = vmatprep.subr.bf16.mxu0 0
      %2061 = vmatpush1.bf16.msra.mxu0 %v1961
      %2062 = vmatprep.subr.bf16.mxu0 0
      %2063 = vmatpush1.bf16.msra.mxu0 %v1960
      %2064 = vmatprep.subr.bf16.mxu0 0
      %2065 = vmatpush1.bf16.msra.mxu0 %v1959
      %2066 = vmatprep.subr.bf16.mxu0 0
      %2067 = vmatpush1.bf16.msra.mxu0 %v1958
      %2068 = vmatprep.subr.bf16.mxu0 0
      %2069 = vmatpush1.bf16.msra.mxu0 %v1957
      %2070 = vmatprep.subr.bf16.mxu0 0
      %2071 = vmatpush2.bf16.msra.mxu0 0
      %2072 = vmatprep.subr.bf16.mxu0 0
      %2073 = vmatpush2.bf16.msra.mxu0 0
      %2074 = vmatprep.subr.bf16.mxu0 0
      %2075 = vmatpush2.bf16.msra.mxu0 0
      %2076 = vmatprep.subr.bf16.mxu0 0
      %2077 = vmatpush2.bf16.msra.mxu0 0
      %2078 = vmatprep.subr.bf16.mxu0 0
      %2079 = vmatpush2.bf16.msra.mxu0 0
      %2080 = vmatprep.subr.bf16.mxu0 0
      %2081 = vmatpush2.bf16.msra.mxu0 0
      %2082 = vmatprep.subr.bf16.mxu0 0
      %2083 = vmatpush2.bf16.msra.mxu0 0
      %2084 = vmatprep.subr.bf16.mxu0 0
      %2085 = vmatpush2.bf16.msra.mxu0 0
      %2086 = vmatprep.mubr.bf16.mxu0 0
      %2087 = vmatmul.mubr.bf16.gmra.mxu0 %v1823
      %v2088 = vpop.f32.mrf.mxu0
      %v2089 = vadd.f32 %v2024, %v2088
      %v2090 = vpop.f32.mrf.mxu0
      %v2091 = vpop.f32.mrf.mxu0
      %v2092 = vadd.f32 %v2027, %v2091
      %v2093 = vpop.f32.mrf.mxu0
      %2094 = vmatprep.mubr.bf16.mxu0 0
      %2095 = vmatmul.mubr.bf16.gmra.mxu0 %v1826
      %v2096 = vpop.f32.mrf.mxu0
      %v2097 = vadd.f32 %v2032, %v2096
      %v2098 = vpop.f32.mrf.mxu0
      %v2099 = vpop.f32.mrf.mxu0
      %v2100 = vadd.f32 %v2035, %v2099
      %v2101 = vpop.f32.mrf.mxu0
      %2102 = vmatprep.mubr.bf16.mxu0 0
      %2103 = vmatmul.mubr.bf16.gmra.mxu0 %v1829
      %v2104 = vpop.f32.mrf.mxu0
      %v2105 = vadd.f32 %v2040, %v2104
      %v2106 = vpop.f32.mrf.mxu0
      %v2107 = vpop.f32.mrf.mxu0
      %v2108 = vadd.f32 %v2043, %v2107
      %v2109 = vpop.f32.mrf.mxu0
      %2110 = vmatprep.mubr.bf16.mxu0 0
      %2111 = vmatmul.mubr.bf16.gmra.mxu0 %v1832
      %v2112 = vpop.f32.mrf.mxu0
      %v2113 = vadd.f32 %v2048, %v2112
      %v2114 = vpop.f32.mrf.mxu0
      %v2115 = vpop.f32.mrf.mxu0
      %v2116 = vadd.f32 %v2051, %v2115
      %v2117 = vpop.f32.mrf.mxu0
      %2118 = vdwg.mxu0
      %v2119 = vunpack.c.l.b16 %v1397
      %v2120 = vunpack.c.l.b16 %v1407
      %s2121 = scalar_lea.vmem %s4, 384
      %v2122 = vld [vmem:[%s2121] sm:$0xf]
      %v2123 = vld [vmem:[%s2121 + $0x4] sm:$0xf]
      %v2124 = vld [vmem:[%s2121 + $0x8] sm:$0xf]
      %v2125 = vld [vmem:[%s2121 + $0xc] sm:$0xf]
      %v2126 = vld [vmem:[%s2121 + $0x10] sm:$0xf]
      %v2127 = vld [vmem:[%s2121 + $0x14] sm:$0xf]
      %v2128 = vld [vmem:[%s2121 + $0x18] sm:$0xf]
      %v2129 = vld [vmem:[%s2121 + $0x1c] sm:$0xf]
      %v2130 = vld [vmem:[%s2121 + $0x20] sm:$0xf]
      %v2131 = vld [vmem:[%s2121 + $0x24] sm:$0xf]
      %v2132 = vld [vmem:[%s2121 + $0x28] sm:$0xf]
      %v2133 = vld [vmem:[%s2121 + $0x2c] sm:$0xf]
      %v2134 = vld [vmem:[%s2121 + $0x30] sm:$0xf]
      %v2135 = vld [vmem:[%s2121 + $0x34] sm:$0xf]
      %v2136 = vld [vmem:[%s2121 + $0x38] sm:$0xf]
      %v2137 = vld [vmem:[%s2121 + $0x3c] sm:$0xf]
      %v2138 = vld [vmem:[%s2121 + $0x40] sm:$0xf]
      %v2139 = vld [vmem:[%s2121 + $0x44] sm:$0xf]
      %v2140 = vld [vmem:[%s2121 + $0x48] sm:$0xf]
      %v2141 = vld [vmem:[%s2121 + $0x4c] sm:$0xf]
      %v2142 = vld [vmem:[%s2121 + $0x50] sm:$0xf]
      %v2143 = vld [vmem:[%s2121 + $0x54] sm:$0xf]
      %v2144 = vld [vmem:[%s2121 + $0x58] sm:$0xf]
      %v2145 = vld [vmem:[%s2121 + $0x5c] sm:$0xf]
      %v2146 = vld [vmem:[%s2121 + $0x60] sm:$0xf]
      %v2147 = vld [vmem:[%s2121 + $0x64] sm:$0xf]
      %v2148 = vld [vmem:[%s2121 + $0x68] sm:$0xf]
      %v2149 = vld [vmem:[%s2121 + $0x6c] sm:$0xf]
      %v2150 = vld [vmem:[%s2121 + $0x70] sm:$0xf]
      %v2151 = vld [vmem:[%s2121 + $0x74] sm:$0xf]
      %v2152 = vld [vmem:[%s2121 + $0x78] sm:$0xf]
      %v2153 = vld [vmem:[%s2121 + $0x7c] sm:$0xf]
      %v2154 = vld [vmem:[%s2121 + $0x80] sm:$0xf]
      %v2155 = vld [vmem:[%s2121 + $0x84] sm:$0xf]
      %v2156 = vld [vmem:[%s2121 + $0x88] sm:$0xf]
      %v2157 = vld [vmem:[%s2121 + $0x8c] sm:$0xf]
      %v2158 = vld [vmem:[%s2121 + $0x90] sm:$0xf]
      %v2159 = vld [vmem:[%s2121 + $0x94] sm:$0xf]
      %v2160 = vld [vmem:[%s2121 + $0x98] sm:$0xf]
      %v2161 = vld [vmem:[%s2121 + $0x9c] sm:$0xf]
      %v2162 = vld [vmem:[%s2121 + $0xa0] sm:$0xf]
      %v2163 = vld [vmem:[%s2121 + $0xa4] sm:$0xf]
      %v2164 = vld [vmem:[%s2121 + $0xa8] sm:$0xf]
      %v2165 = vld [vmem:[%s2121 + $0xac] sm:$0xf]
      %v2166 = vld [vmem:[%s2121 + $0xb0] sm:$0xf]
      %v2167 = vld [vmem:[%s2121 + $0xb4] sm:$0xf]
      %v2168 = vld [vmem:[%s2121 + $0xb8] sm:$0xf]
      %v2169 = vld [vmem:[%s2121 + $0xbc] sm:$0xf]
      %v2170 = vpack.c.b16 %v1316, %v1314
      %v2171 = vpack.c.b16 %v2119, %v1472
      %v2172 = vpack.c.b16 %v2120, %v1473
      %v2224 = vunpack.c.l.b16 %v2122
      %v2225 = vunpack.c.l.b16 %v2123
      %v2226 = vunpack.c.l.b16 %v2124
      %v2227 = vunpack.c.l.b16 %v2125
      %v2228 = vunpack.c.l.b16 %v2126
      %v2229 = vunpack.c.l.b16 %v2127
      %v2230 = vunpack.c.l.b16 %v2128
      %v2231 = vunpack.c.l.b16 %v2129
      %v2232 = vunpack.c.l.b16 %v2130
      %v2233 = vunpack.c.l.b16 %v2131
      %v2234 = vunpack.c.l.b16 %v2132
      %v2235 = vunpack.c.l.b16 %v2133
      %v2236 = vunpack.c.l.b16 %v2134
      %v2237 = vunpack.c.l.b16 %v2135
      %v2238 = vunpack.c.l.b16 %v2136
      %v2239 = vunpack.c.l.b16 %v2137
      %v2240 = vunpack.c.l.b16 %v2138
      %v2241 = vunpack.c.l.b16 %v2139
      %v2242 = vunpack.c.l.b16 %v2140
      %v2243 = vunpack.c.l.b16 %v2141
      %v2244 = vunpack.c.l.b16 %v2142
      %v2245 = vunpack.c.l.b16 %v2143
      %v2246 = vunpack.c.l.b16 %v2144
      %v2247 = vunpack.c.l.b16 %v2145
      %v2248 = vunpack.c.l.b16 %v2146
      %v2249 = vunpack.c.l.b16 %v2147
      %v2250 = vunpack.c.l.b16 %v2148
      %v2251 = vunpack.c.l.b16 %v2149
      %v2252 = vunpack.c.l.b16 %v2150
      %v2253 = vunpack.c.l.b16 %v2151
      %v2254 = vunpack.c.l.b16 %v2152
      %v2255 = vunpack.c.l.b16 %v2153
      %v2256 = vunpack.c.l.b16 %v2154
      %v2257 = vunpack.c.l.b16 %v2155
      %v2258 = vunpack.c.l.b16 %v2156
      %v2259 = vunpack.c.l.b16 %v2157
      %v2260 = vunpack.c.l.b16 %v2158
      %v2261 = vunpack.c.l.b16 %v2159
      %v2262 = vunpack.c.l.b16 %v2160
      %v2263 = vunpack.c.l.b16 %v2161
      %v2264 = vunpack.c.l.b16 %v2162
      %v2265 = vunpack.c.l.b16 %v2163
      %v2266 = vunpack.c.l.b16 %v2164
      %v2267 = vunpack.c.l.b16 %v2165
      %v2268 = vunpack.c.l.b16 %v2166
      %v2269 = vunpack.c.l.b16 %v2167
      %v2270 = vunpack.c.l.b16 %v2168
      %v2271 = vunpack.c.l.b16 %v2169
      %v2272 = vpack.c.b16 %v2225, %v2224
      %v2273 = vpack.c.b16 %v2227, %v2226
      %v2274 = vpack.c.b16 %v2229, %v2228
      %v2275 = vpack.c.b16 %v2231, %v2230
      %v2276 = vpack.c.b16 %v2233, %v2232
      %v2277 = vpack.c.b16 %v2235, %v2234
      %v2278 = vpack.c.b16 %v2237, %v2236
      %v2279 = vpack.c.b16 %v2239, %v2238
      %v2280 = vpack.c.b16 %v2241, %v2240
      %v2281 = vpack.c.b16 %v2243, %v2242
      %v2282 = vpack.c.b16 %v2245, %v2244
      %v2283 = vpack.c.b16 %v2247, %v2246
      %v2284 = vpack.c.b16 %v2249, %v2248
      %v2285 = vpack.c.b16 %v2251, %v2250
      %v2286 = vpack.c.b16 %v2253, %v2252
      %v2287 = vpack.c.b16 %v2255, %v2254
      %v2288 = vpack.c.b16 %v2257, %v2256
      %v2289 = vpack.c.b16 %v2259, %v2258
      %v2290 = vpack.c.b16 %v2261, %v2260
      %v2291 = vpack.c.b16 %v2263, %v2262
      %v2292 = vpack.c.b16 %v2265, %v2264
      %v2293 = vpack.c.b16 %v2267, %v2266
      %v2294 = vpack.c.b16 %v2269, %v2268
      %v2295 = vpack.c.b16 %v2271, %v2270
      %2320 = vmatprep.subr.bf16.mxu0 0
      %2321 = vmatpush1.bf16.msra.mxu0 %v2279
      %2322 = vmatprep.subr.bf16.mxu0 0
      %2323 = vmatpush1.bf16.msra.mxu0 %v2278
      %2324 = vmatprep.subr.bf16.mxu0 0
      %2325 = vmatpush1.bf16.msra.mxu0 %v2277
      %2326 = vmatprep.subr.bf16.mxu0 0
      %2327 = vmatpush1.bf16.msra.mxu0 %v2276
      %2328 = vmatprep.subr.bf16.mxu0 0
      %2329 = vmatpush1.bf16.msra.mxu0 %v2275
      %2330 = vmatprep.subr.bf16.mxu0 0
      %2331 = vmatpush1.bf16.msra.mxu0 %v2274
      %2332 = vmatprep.subr.bf16.mxu0 0
      %2333 = vmatpush1.bf16.msra.mxu0 %v2273
      %2334 = vmatprep.subr.bf16.mxu0 0
      %2335 = vmatpush1.bf16.msra.mxu0 %v2272
      %2336 = vmatprep.subr.bf16.mxu0 0
      %2337 = vmatpush2.bf16.msra.mxu0 %v2287
      %2338 = vmatprep.subr.bf16.mxu0 0
      %2339 = vmatpush2.bf16.msra.mxu0 %v2286
      %2340 = vmatprep.subr.bf16.mxu0 0
      %2341 = vmatpush2.bf16.msra.mxu0 %v2285
      %2342 = vmatprep.subr.bf16.mxu0 0
      %2343 = vmatpush2.bf16.msra.mxu0 %v2284
      %2344 = vmatprep.subr.bf16.mxu0 0
      %2345 = vmatpush2.bf16.msra.mxu0 %v2283
      %2346 = vmatprep.subr.bf16.mxu0 0
      %2347 = vmatpush2.bf16.msra.mxu0 %v2282
      %2348 = vmatprep.subr.bf16.mxu0 0
      %2349 = vmatpush2.bf16.msra.mxu0 %v2281
      %2350 = vmatprep.subr.bf16.mxu0 0
      %2351 = vmatpush2.bf16.msra.mxu0 %v2280
      %2352 = vmatprep.mubr.bf16.mxu0 %v1825
      %2353 = vmatmul.mubr.bf16.gmra.mxu0 %v1824
      %v2354 = vpop.f32.mrf.mxu0
      %v2355 = vadd.f32 0.0, %v2354
      %v2356 = vpop.f32.mrf.mxu0
      %v2357 = vpop.f32.mrf.mxu0
      %v2358 = vadd.f32 0.0, %v2357
      %v2359 = vpop.f32.mrf.mxu0
      %2360 = vmatprep.mubr.bf16.mxu0 %v1828
      %2361 = vmatmul.mubr.bf16.gmra.mxu0 %v1827
      %v2362 = vpop.f32.mrf.mxu0
      %v2363 = vadd.f32 0.0, %v2362
      %v2364 = vpop.f32.mrf.mxu0
      %v2365 = vpop.f32.mrf.mxu0
      %v2366 = vadd.f32 0.0, %v2365
      %v2367 = vpop.f32.mrf.mxu0
      %2368 = vmatprep.mubr.bf16.mxu0 %v1831
      %2369 = vmatmul.mubr.bf16.gmra.mxu0 %v1830
      %v2370 = vpop.f32.mrf.mxu0
      %v2371 = vadd.f32 0.0, %v2370
      %v2372 = vpop.f32.mrf.mxu0
      %v2373 = vpop.f32.mrf.mxu0
      %v2374 = vadd.f32 0.0, %v2373
      %v2375 = vpop.f32.mrf.mxu0
      %2376 = vmatprep.mubr.bf16.mxu0 %v2171
      %2377 = vmatmul.mubr.bf16.gmra.mxu0 %v2170
      %v2378 = vpop.f32.mrf.mxu0
      %v2379 = vadd.f32 0.0, %v2378
      %v2380 = vpop.f32.mrf.mxu0
      %v2381 = vpop.f32.mrf.mxu0
      %v2382 = vadd.f32 0.0, %v2381
      %v2383 = vpop.f32.mrf.mxu0
      %2384 = vdwg.mxu0
      %2385 = vmatprep.subr.bf16.mxu0 0
      %2386 = vmatpush1.bf16.msra.mxu0 %v2295
      %2387 = vmatprep.subr.bf16.mxu0 0
      %2388 = vmatpush1.bf16.msra.mxu0 %v2294
      %2389 = vmatprep.subr.bf16.mxu0 0
      %2390 = vmatpush1.bf16.msra.mxu0 %v2293
      %2391 = vmatprep.subr.bf16.mxu0 0
      %2392 = vmatpush1.bf16.msra.mxu0 %v2292
      %2393 = vmatprep.subr.bf16.mxu0 0
      %2394 = vmatpush1.bf16.msra.mxu0 %v2291
      %2395 = vmatprep.subr.bf16.mxu0 0
      %2396 = vmatpush1.bf16.msra.mxu0 %v2290
      %2397 = vmatprep.subr.bf16.mxu0 0
      %2398 = vmatpush1.bf16.msra.mxu0 %v2289
      %2399 = vmatprep.subr.bf16.mxu0 0
      %2400 = vmatpush1.bf16.msra.mxu0 %v2288
      %2401 = vmatprep.subr.bf16.mxu0 0
      %2402 = vmatpush2.bf16.msra.mxu0 0
      %2403 = vmatprep.subr.bf16.mxu0 0
      %2404 = vmatpush2.bf16.msra.mxu0 0
      %2405 = vmatprep.subr.bf16.mxu0 0
      %2406 = vmatpush2.bf16.msra.mxu0 0
      %2407 = vmatprep.subr.bf16.mxu0 0
      %2408 = vmatpush2.bf16.msra.mxu0 0
      %2409 = vmatprep.subr.bf16.mxu0 0
      %2410 = vmatpush2.bf16.msra.mxu0 0
      %2411 = vmatprep.subr.bf16.mxu0 0
      %2412 = vmatpush2.bf16.msra.mxu0 0
      %2413 = vmatprep.subr.bf16.mxu0 0
      %2414 = vmatpush2.bf16.msra.mxu0 0
      %2415 = vmatprep.subr.bf16.mxu0 0
      %2416 = vmatpush2.bf16.msra.mxu0 0
      %2417 = vmatprep.mubr.bf16.mxu0 0
      %2418 = vmatmul.mubr.bf16.gmra.mxu0 %v1826
      %v2419 = vpop.f32.mrf.mxu0
      %v2420 = vadd.f32 %v2355, %v2419
      %v2421 = vpop.f32.mrf.mxu0
      %v2422 = vpop.f32.mrf.mxu0
      %v2423 = vadd.f32 %v2358, %v2422
      %v2424 = vpop.f32.mrf.mxu0
      %2425 = vmatprep.mubr.bf16.mxu0 0
      %2426 = vmatmul.mubr.bf16.gmra.mxu0 %v1829
      %v2427 = vpop.f32.mrf.mxu0
      %v2428 = vadd.f32 %v2363, %v2427
      %v2429 = vpop.f32.mrf.mxu0
      %v2430 = vpop.f32.mrf.mxu0
      %v2431 = vadd.f32 %v2366, %v2430
      %v2432 = vpop.f32.mrf.mxu0
      %2433 = vmatprep.mubr.bf16.mxu0 0
      %2434 = vmatmul.mubr.bf16.gmra.mxu0 %v1832
      %v2435 = vpop.f32.mrf.mxu0
      %v2436 = vadd.f32 %v2371, %v2435
      %v2437 = vpop.f32.mrf.mxu0
      %v2438 = vpop.f32.mrf.mxu0
      %v2439 = vadd.f32 %v2374, %v2438
      %v2440 = vpop.f32.mrf.mxu0
      %2441 = vmatprep.mubr.bf16.mxu0 0
      %2442 = vmatmul.mubr.bf16.gmra.mxu0 %v2172
      %v2443 = vpop.f32.mrf.mxu0
      %v2444 = vadd.f32 %v2379, %v2443
      %v2445 = vpop.f32.mrf.mxu0
      %v2446 = vpop.f32.mrf.mxu0
      %v2447 = vadd.f32 %v2382, %v2446
      %v2448 = vpop.f32.mrf.mxu0
      %2449 = vdwg.mxu0
      %v2450 = vadd.f32 %v2089, %v2420
      %v2451 = vadd.f32 %v2092, %v2423
      %v2452 = vadd.f32 %v2097, %v2428
      %v2453 = vadd.f32 %v2100, %v2431
      %v2454 = vadd.f32 %v2105, %v2436
      %v2455 = vadd.f32 %v2108, %v2439
      %v2456 = vadd.f32 %v2113, %v2444
      %v2457 = vadd.f32 %v2116, %v2447
      %v2458 = vld [vmem:[%s5] sm:$0x1]
      %v2460 = vlaneseq
      %v2461 = vshrl.u32 %v2460, 7
      %v2462 = vsub.s32 0, %v2461
      %v2463 = vrot.slane %v2458, %v2462
      %v2465 = vmul.f32 %v2450, %v2463
      %v2466 = vmul.f32 %v2451, %v2463
      %v2467 = vmul.f32 %v2452, %v2463
      %v2468 = vmul.f32 %v2453, %v2463
      %v2469 = vmul.f32 %v2454, %v2463
      %v2470 = vmul.f32 %v2455, %v2463
      %v2471 = vmul.f32 %v2456, %v2463
      %v2472 = vmul.f32 %v2457, %v2463
      %v2473 = vld [vmem:[%s6] sm:$0x1]
      %v2475 = vlaneseq
      %v2476 = vshrl.u32 %v2475, 7
      %v2477 = vsub.s32 0, %v2476
      %v2478 = vrot.slane %v2473, %v2477
      %v2480 = vadd.f32 %v2465, %v2478
      %v2481 = vadd.f32 %v2466, %v2478
      %v2482 = vadd.f32 %v2467, %v2478
      %v2483 = vadd.f32 %v2468, %v2478
      %v2484 = vadd.f32 %v2469, %v2478
      %v2485 = vadd.f32 %v2470, %v2478
      %v2486 = vadd.f32 %v2471, %v2478
      %v2487 = vadd.f32 %v2472, %v2478
      %v2488 = vmax.f32 %v2480, 0.0
      %v2489 = vmax.f32 %v2481, 0.0
      %v2490 = vmax.f32 %v2482, 0.0
      %v2491 = vmax.f32 %v2483, 0.0
      %v2492 = vmax.f32 %v2484, 0.0
      %v2493 = vmax.f32 %v2485, 0.0
      %v2494 = vmax.f32 %v2486, 0.0
      %v2495 = vmax.f32 %v2487, 0.0
      %2496 = vst [vmem:[%s314] sm:$0xff] %v2488
      %2497 = vst [vmem:[%s314 + $0x8] sm:$0xff] %v2489
      %2498 = vst [vmem:[%s314 + $0x10] sm:$0xff] %v2490
      %2499 = vst [vmem:[%s314 + $0x18] sm:$0xff] %v2491
      %2500 = vst [vmem:[%s314 + $0x20] sm:$0xff] %v2492
      %2501 = vst [vmem:[%s314 + $0x28] sm:$0xff] %v2493
      %2502 = vst [vmem:[%s314 + $0x30] sm:$0xff] %v2494
      %2503 = vst [vmem:[%s314 + $0x38] sm:$0xff] %v2495
      %s2504 = smul.u32 8, %s23
      %p2505 = scmp.lt.s32.totalorder %s22, 1
      %s2506 = scalar_select %p2505, %s22, 1
      %p2507 = scmp.lt.s32.totalorder %s2504, 7
      %s2508 = scalar_select %p2507, %s2504, 7
      %s2509 = smul.addr %s2506, 8
      %s2510 = sadd.s32 %s2508, %s2509
      %s2511 = smul.addr %s2510, 8
      %s2512 = scalar_lea.vmem %s7, %s2511
      // Predicated region
      $region53: #{down_forward.1} parent=47 // pred_check
        %p2513 = pneg %p204
      $region54: #{down_forward.1} parent=47 // pred_check_branch
        %2515 = sbr.rel (%p2513) target = $region56
      $region55: #{down_forward.1} parent=47 // pred_region
        %s2516 = smul.u32 8, %s23
      $region56: #{down_forward.1} parent=47 // pred_fallthru
        _
    $region48: #{down_forward.1} parent=5 // pred_fallthru
      _
    %p2517 = scmp.le.s32.totalorder 2, %s13
    // Predicated region
    $region57: #{down_forward.1} parent=5 // pred_check
      %p2518 = pneg %p2517
    $region58: #{down_forward.1} parent=5 // pred_check_branch
      %2520 = sbr.rel (%p2518) target = $region60
    $region59: #{down_forward.1} parent=5 // pred_region
      %s2521 = ssub.s32 %s13, 2
      // Predicated region
      $region61: #{down_forward.1} parent=59 // pred_check
        %p2522 = pneg %p210
      $region62: #{down_forward.1} parent=59 // pred_check_branch
        %2524 = sbr.rel (%p2522) target = $region64
      $region63: #{down_forward.1} parent=59 // pred_region
        %s2525 = smul.u32 8, %s25
        %p2526 = scmp.lt.s32.totalorder %s24, 1
        %s2527 = scalar_select %p2526, %s24, 1
        %p2528 = scmp.lt.s32.totalorder %s2525, 7
        %s2529 = scalar_select %p2528, %s2525, 7
        %s2530 = smul.addr %s2527, 8
        %s2531 = sadd.s32 %s2529, %s2530
        %s2532 = smul.addr %s2531, 8
        %s2533 = scalar_lea.vmem %s7, %s2532
      $region64: #{down_forward.1} parent=59 // pred_fallthru
        _
    $region60: #{down_forward.1} parent=5 // pred_fallthru
      _
  $region6: #{down_forward.1} parent=0 // loop_footer
    %s17 = sadd.s32 1, %s13
  $region7: #{down_forward.1} parent=0 // loop_footer_branch
    %12 = sbr.rel target = $region3
  $region8: #{down_forward.1} parent=0 // loop_exit
    _

</llo_original>
